<compile_context>
chip_gen: v7x
topology: tpu7x:2x2x1
jax: 0.10.0
libtpu: 0.0.40
codegen_flags: <defaults>
</compile_context>

<pallas_src>
import functools

import jax
import jax.numpy as jnp
import numpy as np
from jax.experimental import pallas as pl
from jax.experimental.pallas import tpu as pltpu


# ----------------------------- Pallas kernel -------------------------------
def gat_fused_kernel(x_ref, adj_ref, w0_ref, a0_ref, w1_ref, a1_ref,
                     out_ref, a_all_ref, fblk_ref, *, H, D, neg_slope):
    """Fused 2-layer GAT forward (inference mode).

    x_ref     : (N, Fin)    node features
    adj_ref   : (N, N)      adjacency, adj[dst, src] > 0 on edges
    w0_ref    : (Fin, H*D)  layer-0 projection, all heads lane-dense
    a0_ref    : (H*D, 2H)   block-diag [attn_l | attn_r] for all heads
    w1_ref    : (H*D, Cp)   layer-1 projection, zero-padded to 128 lanes
    a1_ref    : (Cp, 2)     layer-1 [attn_l, attn_r], zero-padded rows
    out_ref   : (N, Cp)     logits (lane-dense store; wrapper slices to C)
    a_all_ref : (N, H*N)    scratch: all heads' attention, lane-dense
    fblk_ref  : (H*N, H*D)  scratch: block-diagonal copy of feat0
    """
    N = adj_ref.shape[0]
    x = x_ref[...]

    # Additive edge mask, built ONCE from the single adjacency input and
    # shared by all H+1 edge softmaxes.  No separate 0/1 mask tensor needed:
    # exp((-1e30) - rowmax) underflows to exactly 0.0 in f32.
    adj_bias = jnp.where(adj_ref[...] > 0.0, 0.0, -1e30)

    def edge_softmax(er_col, el_row):
        # er_col: (N, 1) destination term, el_row: (1, N) source term.
        e = er_col + el_row                              # (N, N): e[dst, src]
        e = jnp.where(e >= 0.0, e, neg_slope * e)        # LeakyReLU (VPU)
        e = e + adj_bias                                 # -1e30 on non-edges
        e = e - jnp.max(e, axis=-1, keepdims=True)
        p = jnp.exp(e)                                   # non-edges -> 0.0
        denom = jnp.sum(p, axis=-1, keepdims=True)
        denom = jnp.maximum(denom, 1e-20)                # zero in-degree guard
        # Exact reciprocal (approx=False) for parity with the f32 reference.
        return p * pl.reciprocal(denom, approx=False)

    # ------------------------- layer 0: H heads -----------------------------
    feat0 = jnp.dot(x, w0_ref[...],
                    preferred_element_type=jnp.float32)          # (N, H*D)
    scores0 = jnp.dot(feat0, a0_ref[...],
                      preferred_element_type=jnp.float32)        # (N, 2H)
    el0_t = jnp.transpose(scores0[:, :H])                        # (H, N) src
    er0 = scores0[:, H:]                                         # (N, H) dst

    # Assemble (a) the lane-dense (N, H*N) attention slab and (b) a
    # block-diagonal (H*N, H*D) copy of feat0 in VMEM scratch so the per-head
    # aggregation collapses into ONE MXU matmul instead of 8 lane-narrow
    # (N,N)@(N,D) dots + a concatenate.
    fblk_ref[...] = jnp.zeros_like(fblk_ref)
    for h in range(H):                                           # static unroll
        a_h = edge_softmax(er0[:, h:h + 1], el0_t[h:h + 1, :])   # (N, N)
        a_all_ref[:, h * N:(h + 1) * N] = a_h
        fblk_ref[h * N:(h + 1) * N, h * D:(h + 1) * D] = \
            feat0[:, h * D:(h + 1) * D]

    h0 = jnp.dot(a_all_ref[...], fblk_ref[...],
                 preferred_element_type=jnp.float32)             # (N, H*D)
    # ELU activation; flatten(1) is identity (already lane-dense (N, H*D)).
    h0 = jnp.where(h0 > 0.0, h0, jnp.exp(h0) - 1.0)

    # ---------------------- layer 1: single head ----------------------------
    feat1 = jnp.dot(h0, w1_ref[...],
                    preferred_element_type=jnp.float32)          # (N, Cp)
    scores1 = jnp.dot(feat1, a1_ref[...],
                      preferred_element_type=jnp.float32)        # (N, 2)
    a1 = edge_softmax(scores1[:, 1:2],                           # er (dst)
                      jnp.transpose(scores1[:, 0:1]))            # el (src)
    # mean over heads is identity (single output head); lane-dense store.
    out_ref[...] = jnp.dot(a1, feat1, preferred_element_type=jnp.float32)


# ------------------------------- wrapper ------------------------------------
@functools.partial(jax.jit, static_argnames=("neg_slope",))
def gat_forward_pallas(x, adj, params, neg_slope=0.2):
    N, _ = x.shape
    H, D = params['al0'].shape
    C = params['w1'].shape[1]
    CP = ((C + 127) // 128) * 128        # lane-dense padded output width

    # block-diagonal attention projection for layer 0: (H*D, 2H)
    eye = jnp.eye(H, dtype=jnp.float32)
    a0_l = (params['al0'][:, :, None] * eye[:, None, :]).reshape(H * D, H)
    a0_r = (params['ar0'][:, :, None] * eye[:, None, :]).reshape(H * D, H)
    A0 = jnp.concatenate([a0_l, a0_r], axis=1)                   # (H*D, 2H)

    # layer-1 weights zero-padded to CP output lanes -> lane-dense final store
    w1p = jnp.zeros((H * D, CP), jnp.float32).at[:, :C].set(params['w1'])
    A1p = jnp.zeros((CP, 2), jnp.float32)
    A1p = A1p.at[:C, 0].set(params['al1'].reshape(C))
    A1p = A1p.at[:C, 1].set(params['ar1'].reshape(C))

    vmem = pl.BlockSpec(memory_space=pltpu.MemorySpace.VMEM)
    kernel = functools.partial(gat_fused_kernel, H=H, D=D, neg_slope=neg_slope)
    out_pad = pl.pallas_call(
        kernel,
        out_shape=jax.ShapeDtypeStruct((N, CP), jnp.float32),
        in_specs=[vmem] * 6,
        out_specs=vmem,
        scratch_shapes=[pltpu.VMEM((N, H * N), jnp.float32),      # attn slab
                        pltpu.VMEM((H * N, H * D), jnp.float32)],  # blkdiag feat
        # TODO(synk): at realistic N, add a grid over destination-row tiles
        # with dimension_semantics=("parallel",) and raise vmem_limit_bytes.
    )(x, adj, params['w0'], A0, w1p, A1p)
    return out_pad[:, :C]


# --------------------------- pure-JAX reference -----------------------------
def gat_layer_ref(x, w, al, ar, adj, neg_slope=0.2):
    # w: (Fin, H*D), al/ar: (H, D).  HIGHEST precision so the f32 reference
    # does not itself introduce bf16-pass matmul error on TPU.
    N = x.shape[0]
    H, D = al.shape
    hp = jax.lax.Precision.HIGHEST
    feat = jnp.dot(x, w, precision=hp).reshape(N, H, D)
    el = jnp.sum(feat * al[None], axis=-1)                       # (N, H)
    er = jnp.sum(feat * ar[None], axis=-1)                       # (N, H)
    e = er[:, None, :] + el[None, :, :]                          # (Ndst,Nsrc,H)
    e = jnp.where(e >= 0, e, neg_slope * e)
    mask = (adj > 0)[:, :, None]
    e = jnp.where(mask, e, -1e30)
    e = e - jnp.max(e, axis=1, keepdims=True)
    p = jnp.exp(e) * mask.astype(jnp.float32)
    denom = jnp.maximum(jnp.sum(p, axis=1, keepdims=True), 1e-20)
    a = p / denom
    return jnp.einsum('nmh,mhd->nhd', a, feat, precision=hp)     # (N, H, D)


def gat_forward_ref(x, adj, params, neg_slope=0.2):
    h = gat_layer_ref(x, params['w0'], params['al0'], params['ar0'], adj,
                      neg_slope)
    h = jnp.where(h > 0, h, jnp.exp(h) - 1.0)                    # ELU
    h = h.reshape(h.shape[0], -1)                                # flatten(1)
    out = gat_layer_ref(h, params['w1'], params['al1'], params['ar1'], adj,
                        neg_slope)
    return jnp.mean(out, axis=1)                                 # (N, C)


# ------------------------------ model glue ----------------------------------
def init_params(key, in_dim, num_hidden, heads, num_classes):
    gain = float(np.sqrt(2.0))                    # calculate_gain('relu')
    k = jax.random.split(key, 6)
    H0, D0 = heads, num_hidden

    # layer 0: fc.weight (H*D, Fin) xavier-normal; stored transposed (Fin, H*D)
    std0 = gain * np.sqrt(2.0 / (in_dim + H0 * D0))
    w0 = jax.random.normal(k[0], (in_dim, H0 * D0), jnp.float32) * std0
    stda0 = gain * np.sqrt(2.0 / (H0 * D0 + D0))
    al0 = jax.random.normal(k[1], (H0, D0), jnp.float32) * stda0
    ar0 = jax.random.normal(k[2], (H0, D0), jnp.float32) * stda0

    # layer 1 (output): in = H0*D0, heads = 1, out = num_classes
    Fin1, C = H0 * D0, num_classes
    std1 = gain * np.sqrt(2.0 / (Fin1 + C))
    w1 = jax.random.normal(k[3], (Fin1, C), jnp.float32) * std1
    stda1 = gain * np.sqrt(2.0 / (C + C))
    al1 = jax.random.normal(k[4], (1, C), jnp.float32) * stda1
    ar1 = jax.random.normal(k[5], (1, C), jnp.float32) * stda1

    return dict(w0=w0, al0=al0, ar0=ar0, w1=w1, al1=al1, ar1=ar1)


# --------------------------------- main --------------------------------------
if __name__ == "__main__":
    N = 32            # number of graph nodes
    IN_DIM = 16       # num_features
    NUM_HIDDEN = 8
    HEADS = 8
    NUM_CLASSES = 4

    key = jax.random.PRNGKey(0)
    kx, kp = jax.random.split(key)

    # node features
    x = jax.random.normal(kx, (N, IN_DIM), dtype=jnp.float32)

    # deterministic graph: ring edges i -> (i+1) % N plus self-loops
    adj_np = np.zeros((N, N), dtype=np.float32)   # adj[dst, src]
    for i in range(N):
        adj_np[i, i] = 1.0                        # self-loop
        adj_np[(i + 1) % N, i] = 1.0              # edge i -> i+1
    adj = jnp.asarray(adj_np)

    params = init_params(kp, IN_DIM, NUM_HIDDEN, HEADS, NUM_CLASSES)

    logits = jax.block_until_ready(gat_forward_pallas(x, adj, params))

    # sanity check against pure-JAX reference.  Tolerance leaves margin for
    # residual TPU matmul / transcendental rounding differences.
    logits_ref = jax.block_until_ready(gat_forward_ref(x, adj, params))
    np.testing.assert_allclose(np.asarray(logits), np.asarray(logits_ref),
                               rtol=5e-3, atol=5e-3)

    assert logits.shape == (N, NUM_CLASSES)
    print("KERNEL_OK")
</pallas_src>

<mosaic_0001>
module attributes {stable_mosaic.version = 11 : i64} {
  func.func @gat_fused_kernel(%arg0: memref<32x16xf32, #tpu.memory_space<vmem>>, %arg1: memref<32x32xf32, #tpu.memory_space<vmem>>, %arg2: memref<16x64xf32, #tpu.memory_space<vmem>>, %arg3: memref<64x16xf32, #tpu.memory_space<vmem>>, %arg4: memref<64x128xf32, #tpu.memory_space<vmem>>, %arg5: memref<128x2xf32, #tpu.memory_space<vmem>>, %arg6: memref<32x128xf32, #tpu.memory_space<vmem>>, %arg7: memref<32x256xf32, #tpu.memory_space<vmem>>, %arg8: memref<256x64xf32, #tpu.memory_space<vmem>>) attributes {dimension_semantics = [], scalar_prefetch = 0 : i64, scratch_operands = 2 : i64, tpu.core_type = #tpu.core_type<tc>} {
    %c0 = arith.constant 0 : index
    %c0_0 = arith.constant 0 : index
    %0 = vector.load %arg0[%c0, %c0_0] : memref<32x16xf32, #tpu.memory_space<vmem>>, vector<32x16xf32>
    %c0_1 = arith.constant 0 : index
    %c0_2 = arith.constant 0 : index
    %1 = vector.load %arg1[%c0_1, %c0_2] : memref<32x32xf32, #tpu.memory_space<vmem>>, vector<32x32xf32>
    %cst = arith.constant 0.000000e+00 : f32
    %2 = vector.broadcast %cst : f32 to vector<32x32xf32>
    %3 = arith.cmpf ogt, %1, %2 : vector<32x32xf32>
    %cst_3 = arith.constant 0.000000e+00 : f32
    %cst_4 = arith.constant -1.000000e+30 : f32
    %4 = vector.broadcast %cst_3 : f32 to vector<32x32xf32>
    %5 = vector.broadcast %cst_4 : f32 to vector<32x32xf32>
    %6 = arith.select %3, %4, %5 : vector<32x32xi1>, vector<32x32xf32>
    %c0_5 = arith.constant 0 : index
    %c0_6 = arith.constant 0 : index
    %7 = vector.load %arg2[%c0_5, %c0_6] : memref<16x64xf32, #tpu.memory_space<vmem>>, vector<16x64xf32>
    %cst_7 = arith.constant dense<0.000000e+00> : vector<32x64xf32>
    %8 = tpu.matmul %0, %7, %cst_7 {dimension_numbers = #tpu.dot_dimension_numbers<[1], [0], [0], [1], [0, 0, 1, 1], [], []>} : vector<32x16xf32>, vector<16x64xf32>, vector<32x64xf32> -> vector<32x64xf32>
    %c0_8 = arith.constant 0 : index
    %c0_9 = arith.constant 0 : index
    %9 = vector.load %arg3[%c0_8, %c0_9] : memref<64x16xf32, #tpu.memory_space<vmem>>, vector<64x16xf32>
    %cst_10 = arith.constant dense<0.000000e+00> : vector<32x16xf32>
    %10 = tpu.matmul %8, %9, %cst_10 {dimension_numbers = #tpu.dot_dimension_numbers<[1], [0], [0], [1], [0, 0, 1, 1], [], []>} : vector<32x64xf32>, vector<64x16xf32>, vector<32x16xf32> -> vector<32x16xf32>
    %11 = vector.extract_strided_slice %10 {offsets = [0, 0], sizes = [32, 8], strides = [1, 1]} : vector<32x16xf32> to vector<32x8xf32>
    %12 = tpu.transpose %11, [1, 0] : vector<32x8xf32> -> vector<8x32xf32>
    %13 = vector.extract_strided_slice %10 {offsets = [0, 8], sizes = [32, 8], strides = [1, 1]} : vector<32x16xf32> to vector<32x8xf32>
    %cst_11 = arith.constant 0.000000e+00 : f32
    %14 = vector.broadcast %cst_11 : f32 to vector<256x64xf32>
    %c0_12 = arith.constant 0 : index
    %c0_13 = arith.constant 0 : index
    %15 = vector.load %arg8[%c0_12, %c0_13] : memref<256x64xf32, #tpu.memory_space<vmem>>, vector<256x64xf32>
    tpu.vector_store %arg8[%c0_12, %c0_13], %14 {strides = array<i32>} : memref<256x64xf32, #tpu.memory_space<vmem>>, vector<256x64xf32>,
    %16 = vector.extract_strided_slice %13 {offsets = [0, 0], sizes = [32, 1], strides = [1, 1]} : vector<32x8xf32> to vector<32x1xf32>
    %17 = vector.extract_strided_slice %12 {offsets = [0, 0], sizes = [1, 32], strides = [1, 1]} : vector<8x32xf32> to vector<1x32xf32>
    %18 = vector.broadcast %16 : vector<32x1xf32> to vector<32x32xf32>
    %19 = vector.broadcast %17 : vector<1x32xf32> to vector<32x32xf32>
    %20 = arith.addf %18, %19 : vector<32x32xf32>
    %cst_14 = arith.constant 0.000000e+00 : f32
    %21 = vector.broadcast %cst_14 : f32 to vector<32x32xf32>
    %22 = arith.cmpf oge, %20, %21 : vector<32x32xf32>
    %cst_15 = arith.constant 2.000000e-01 : f32
    %23 = vector.broadcast %cst_15 : f32 to vector<32x32xf32>
    %24 = arith.mulf %23, %20 : vector<32x32xf32>
    %25 = arith.select %22, %20, %24 : vector<32x32xi1>, vector<32x32xf32>
    %26 = arith.addf %25, %6 : vector<32x32xf32>
    %cst_16 = arith.constant dense<0xFF800000> : vector<32xf32>
    %27 = vector.multi_reduction <maximumf>, %26, %cst_16 [1] : vector<32x32xf32> to vector<32xf32>
    %28 = vector.shape_cast %27 : vector<32xf32> to vector<32x1xf32>
    %29 = vector.broadcast %28 : vector<32x1xf32> to vector<32x32xf32>
    %30 = arith.subf %26, %29 : vector<32x32xf32>
    %31 = math.exp %30 : vector<32x32xf32>
    %cst_17 = arith.constant dense<0.000000e+00> : vector<32xf32>
    %32 = vector.multi_reduction <add>, %31, %cst_17 [1] : vector<32x32xf32> to vector<32xf32>
    %33 = vector.shape_cast %32 : vector<32xf32> to vector<32x1xf32>
    %cst_18 = arith.constant 9.99999968E-21 : f32
    %34 = vector.broadcast %cst_18 : f32 to vector<32x1xf32>
    %35 = arith.maximumf %33, %34 : vector<32x1xf32>
    %36 = tpu.reciprocal %35 : vector<32x1xf32> -> vector<32x1xf32>
    %37 = vector.broadcast %36 : vector<32x1xf32> to vector<32x32xf32>
    %38 = arith.mulf %31, %37 : vector<32x32xf32>
    %c0_19 = arith.constant 0 : index
    %c0_20 = arith.constant 0 : index
    %39 = vector.load %arg7[%c0_19, %c0_20] : memref<32x256xf32, #tpu.memory_space<vmem>>, vector<32x32xf32>
    tpu.vector_store %arg7[%c0_19, %c0_20], %38 {strides = array<i32>} : memref<32x256xf32, #tpu.memory_space<vmem>>, vector<32x32xf32>,
    %40 = vector.extract_strided_slice %8 {offsets = [0, 0], sizes = [32, 8], strides = [1, 1]} : vector<32x64xf32> to vector<32x8xf32>
    %c0_21 = arith.constant 0 : index
    %c0_22 = arith.constant 0 : index
    %41 = vector.load %arg8[%c0_21, %c0_22] : memref<256x64xf32, #tpu.memory_space<vmem>>, vector<32x8xf32>
    tpu.vector_store %arg8[%c0_21, %c0_22], %40 {strides = array<i32>} : memref<256x64xf32, #tpu.memory_space<vmem>>, vector<32x8xf32>,
    %42 = vector.extract_strided_slice %13 {offsets = [0, 1], sizes = [32, 1], strides = [1, 1]} : vector<32x8xf32> to vector<32x1xf32>
    %43 = vector.extract_strided_slice %12 {offsets = [1, 0], sizes = [1, 32], strides = [1, 1]} : vector<8x32xf32> to vector<1x32xf32>
    %44 = vector.broadcast %42 : vector<32x1xf32> to vector<32x32xf32>
    %45 = vector.broadcast %43 : vector<1x32xf32> to vector<32x32xf32>
    %46 = arith.addf %44, %45 : vector<32x32xf32>
    %cst_23 = arith.constant 0.000000e+00 : f32
    %47 = vector.broadcast %cst_23 : f32 to vector<32x32xf32>
    %48 = arith.cmpf oge, %46, %47 : vector<32x32xf32>
    %cst_24 = arith.constant 2.000000e-01 : f32
    %49 = vector.broadcast %cst_24 : f32 to vector<32x32xf32>
    %50 = arith.mulf %49, %46 : vector<32x32xf32>
    %51 = arith.select %48, %46, %50 : vector<32x32xi1>, vector<32x32xf32>
    %52 = arith.addf %51, %6 : vector<32x32xf32>
    %cst_25 = arith.constant dense<0xFF800000> : vector<32xf32>
    %53 = vector.multi_reduction <maximumf>, %52, %cst_25 [1] : vector<32x32xf32> to vector<32xf32>
    %54 = vector.shape_cast %53 : vector<32xf32> to vector<32x1xf32>
    %55 = vector.broadcast %54 : vector<32x1xf32> to vector<32x32xf32>
    %56 = arith.subf %52, %55 : vector<32x32xf32>
    %57 = math.exp %56 : vector<32x32xf32>
    %cst_26 = arith.constant dense<0.000000e+00> : vector<32xf32>
    %58 = vector.multi_reduction <add>, %57, %cst_26 [1] : vector<32x32xf32> to vector<32xf32>
    %59 = vector.shape_cast %58 : vector<32xf32> to vector<32x1xf32>
    %cst_27 = arith.constant 9.99999968E-21 : f32
    %60 = vector.broadcast %cst_27 : f32 to vector<32x1xf32>
    %61 = arith.maximumf %59, %60 : vector<32x1xf32>
    %62 = tpu.reciprocal %61 : vector<32x1xf32> -> vector<32x1xf32>
    %63 = vector.broadcast %62 : vector<32x1xf32> to vector<32x32xf32>
    %64 = arith.mulf %57, %63 : vector<32x32xf32>
    %c0_28 = arith.constant 0 : index
    %c32 = arith.constant 32 : index
    %65 = vector.load %arg7[%c0_28, %c32] : memref<32x256xf32, #tpu.memory_space<vmem>>, vector<32x32xf32>
    tpu.vector_store %arg7[%c0_28, %c32], %64 {strides = array<i32>} : memref<32x256xf32, #tpu.memory_space<vmem>>, vector<32x32xf32>,
    %66 = vector.extract_strided_slice %8 {offsets = [0, 8], sizes = [32, 8], strides = [1, 1]} : vector<32x64xf32> to vector<32x8xf32>
    %c32_29 = arith.constant 32 : index
    %c8 = arith.constant 8 : index
    %67 = vector.load %arg8[%c32_29, %c8] : memref<256x64xf32, #tpu.memory_space<vmem>>, vector<32x8xf32>
    tpu.vector_store %arg8[%c32_29, %c8], %66 {strides = array<i32>} : memref<256x64xf32, #tpu.memory_space<vmem>>, vector<32x8xf32>,
    %68 = vector.extract_strided_slice %13 {offsets = [0, 2], sizes = [32, 1], strides = [1, 1]} : vector<32x8xf32> to vector<32x1xf32>
    %69 = vector.extract_strided_slice %12 {offsets = [2, 0], sizes = [1, 32], strides = [1, 1]} : vector<8x32xf32> to vector<1x32xf32>
    %70 = vector.broadcast %68 : vector<32x1xf32> to vector<32x32xf32>
    %71 = vector.broadcast %69 : vector<1x32xf32> to vector<32x32xf32>
    %72 = arith.addf %70, %71 : vector<32x32xf32>
    %cst_30 = arith.constant 0.000000e+00 : f32
    %73 = vector.broadcast %cst_30 : f32 to vector<32x32xf32>
    %74 = arith.cmpf oge, %72, %73 : vector<32x32xf32>
    %cst_31 = arith.constant 2.000000e-01 : f32
    %75 = vector.broadcast %cst_31 : f32 to vector<32x32xf32>
    %76 = arith.mulf %75, %72 : vector<32x32xf32>
    %77 = arith.select %74, %72, %76 : vector<32x32xi1>, vector<32x32xf32>
    %78 = arith.addf %77, %6 : vector<32x32xf32>
    %cst_32 = arith.constant dense<0xFF800000> : vector<32xf32>
    %79 = vector.multi_reduction <maximumf>, %78, %cst_32 [1] : vector<32x32xf32> to vector<32xf32>
    %80 = vector.shape_cast %79 : vector<32xf32> to vector<32x1xf32>
    %81 = vector.broadcast %80 : vector<32x1xf32> to vector<32x32xf32>
    %82 = arith.subf %78, %81 : vector<32x32xf32>
    %83 = math.exp %82 : vector<32x32xf32>
    %cst_33 = arith.constant dense<0.000000e+00> : vector<32xf32>
    %84 = vector.multi_reduction <add>, %83, %cst_33 [1] : vector<32x32xf32> to vector<32xf32>
    %85 = vector.shape_cast %84 : vector<32xf32> to vector<32x1xf32>
    %cst_34 = arith.constant 9.99999968E-21 : f32
    %86 = vector.broadcast %cst_34 : f32 to vector<32x1xf32>
    %87 = arith.maximumf %85, %86 : vector<32x1xf32>
    %88 = tpu.reciprocal %87 : vector<32x1xf32> -> vector<32x1xf32>
    %89 = vector.broadcast %88 : vector<32x1xf32> to vector<32x32xf32>
    %90 = arith.mulf %83, %89 : vector<32x32xf32>
    %c0_35 = arith.constant 0 : index
    %c64 = arith.constant 64 : index
    %91 = vector.load %arg7[%c0_35, %c64] : memref<32x256xf32, #tpu.memory_space<vmem>>, vector<32x32xf32>
    tpu.vector_store %arg7[%c0_35, %c64], %90 {strides = array<i32>} : memref<32x256xf32, #tpu.memory_space<vmem>>, vector<32x32xf32>,
    %92 = vector.extract_strided_slice %8 {offsets = [0, 16], sizes = [32, 8], strides = [1, 1]} : vector<32x64xf32> to vector<32x8xf32>
    %c64_36 = arith.constant 64 : index
    %c16 = arith.constant 16 : index
    %93 = vector.load %arg8[%c64_36, %c16] : memref<256x64xf32, #tpu.memory_space<vmem>>, vector<32x8xf32>
    tpu.vector_store %arg8[%c64_36, %c16], %92 {strides = array<i32>} : memref<256x64xf32, #tpu.memory_space<vmem>>, vector<32x8xf32>,
    %94 = vector.extract_strided_slice %13 {offsets = [0, 3], sizes = [32, 1], strides = [1, 1]} : vector<32x8xf32> to vector<32x1xf32>
    %95 = vector.extract_strided_slice %12 {offsets = [3, 0], sizes = [1, 32], strides = [1, 1]} : vector<8x32xf32> to vector<1x32xf32>
    %96 = vector.broadcast %94 : vector<32x1xf32> to vector<32x32xf32>
    %97 = vector.broadcast %95 : vector<1x32xf32> to vector<32x32xf32>
    %98 = arith.addf %96, %97 : vector<32x32xf32>
    %cst_37 = arith.constant 0.000000e+00 : f32
    %99 = vector.broadcast %cst_37 : f32 to vector<32x32xf32>
    %100 = arith.cmpf oge, %98, %99 : vector<32x32xf32>
    %cst_38 = arith.constant 2.000000e-01 : f32
    %101 = vector.broadcast %cst_38 : f32 to vector<32x32xf32>
    %102 = arith.mulf %101, %98 : vector<32x32xf32>
    %103 = arith.select %100, %98, %102 : vector<32x32xi1>, vector<32x32xf32>
    %104 = arith.addf %103, %6 : vector<32x32xf32>
    %cst_39 = arith.constant dense<0xFF800000> : vector<32xf32>
    %105 = vector.multi_reduction <maximumf>, %104, %cst_39 [1] : vector<32x32xf32> to vector<32xf32>
    %106 = vector.shape_cast %105 : vector<32xf32> to vector<32x1xf32>
    %107 = vector.broadcast %106 : vector<32x1xf32> to vector<32x32xf32>
    %108 = arith.subf %104, %107 : vector<32x32xf32>
    %109 = math.exp %108 : vector<32x32xf32>
    %cst_40 = arith.constant dense<0.000000e+00> : vector<32xf32>
    %110 = vector.multi_reduction <add>, %109, %cst_40 [1] : vector<32x32xf32> to vector<32xf32>
    %111 = vector.shape_cast %110 : vector<32xf32> to vector<32x1xf32>
    %cst_41 = arith.constant 9.99999968E-21 : f32
    %112 = vector.broadcast %cst_41 : f32 to vector<32x1xf32>
    %113 = arith.maximumf %111, %112 : vector<32x1xf32>
    %114 = tpu.reciprocal %113 : vector<32x1xf32> -> vector<32x1xf32>
    %115 = vector.broadcast %114 : vector<32x1xf32> to vector<32x32xf32>
    %116 = arith.mulf %109, %115 : vector<32x32xf32>
    %c0_42 = arith.constant 0 : index
    %c96 = arith.constant 96 : index
    %117 = vector.load %arg7[%c0_42, %c96] : memref<32x256xf32, #tpu.memory_space<vmem>>, vector<32x32xf32>
    tpu.vector_store %arg7[%c0_42, %c96], %116 {strides = array<i32>} : memref<32x256xf32, #tpu.memory_space<vmem>>, vector<32x32xf32>,
    %118 = vector.extract_strided_slice %8 {offsets = [0, 24], sizes = [32, 8], strides = [1, 1]} : vector<32x64xf32> to vector<32x8xf32>
    %c96_43 = arith.constant 96 : index
    %c24 = arith.constant 24 : index
    %119 = vector.load %arg8[%c96_43, %c24] : memref<256x64xf32, #tpu.memory_space<vmem>>, vector<32x8xf32>
    tpu.vector_store %arg8[%c96_43, %c24], %118 {strides = array<i32>} : memref<256x64xf32, #tpu.memory_space<vmem>>, vector<32x8xf32>,
    %120 = vector.extract_strided_slice %13 {offsets = [0, 4], sizes = [32, 1], strides = [1, 1]} : vector<32x8xf32> to vector<32x1xf32>
    %121 = vector.extract_strided_slice %12 {offsets = [4, 0], sizes = [1, 32], strides = [1, 1]} : vector<8x32xf32> to vector<1x32xf32>
    %122 = vector.broadcast %120 : vector<32x1xf32> to vector<32x32xf32>
    %123 = vector.broadcast %121 : vector<1x32xf32> to vector<32x32xf32>
    %124 = arith.addf %122, %123 : vector<32x32xf32>
    %cst_44 = arith.constant 0.000000e+00 : f32
    %125 = vector.broadcast %cst_44 : f32 to vector<32x32xf32>
    %126 = arith.cmpf oge, %124, %125 : vector<32x32xf32>
    %cst_45 = arith.constant 2.000000e-01 : f32
    %127 = vector.broadcast %cst_45 : f32 to vector<32x32xf32>
    %128 = arith.mulf %127, %124 : vector<32x32xf32>
    %129 = arith.select %126, %124, %128 : vector<32x32xi1>, vector<32x32xf32>
    %130 = arith.addf %129, %6 : vector<32x32xf32>
    %cst_46 = arith.constant dense<0xFF800000> : vector<32xf32>
    %131 = vector.multi_reduction <maximumf>, %130, %cst_46 [1] : vector<32x32xf32> to vector<32xf32>
    %132 = vector.shape_cast %131 : vector<32xf32> to vector<32x1xf32>
    %133 = vector.broadcast %132 : vector<32x1xf32> to vector<32x32xf32>
    %134 = arith.subf %130, %133 : vector<32x32xf32>
    %135 = math.exp %134 : vector<32x32xf32>
    %cst_47 = arith.constant dense<0.000000e+00> : vector<32xf32>
    %136 = vector.multi_reduction <add>, %135, %cst_47 [1] : vector<32x32xf32> to vector<32xf32>
    %137 = vector.shape_cast %136 : vector<32xf32> to vector<32x1xf32>
    %cst_48 = arith.constant 9.99999968E-21 : f32
    %138 = vector.broadcast %cst_48 : f32 to vector<32x1xf32>
    %139 = arith.maximumf %137, %138 : vector<32x1xf32>
    %140 = tpu.reciprocal %139 : vector<32x1xf32> -> vector<32x1xf32>
    %141 = vector.broadcast %140 : vector<32x1xf32> to vector<32x32xf32>
    %142 = arith.mulf %135, %141 : vector<32x32xf32>
    %c0_49 = arith.constant 0 : index
    %c128 = arith.constant 128 : index
    %143 = vector.load %arg7[%c0_49, %c128] : memref<32x256xf32, #tpu.memory_space<vmem>>, vector<32x32xf32>
    tpu.vector_store %arg7[%c0_49, %c128], %142 {strides = array<i32>} : memref<32x256xf32, #tpu.memory_space<vmem>>, vector<32x32xf32>,
    %144 = vector.extract_strided_slice %8 {offsets = [0, 32], sizes = [32, 8], strides = [1, 1]} : vector<32x64xf32> to vector<32x8xf32>
    %c128_50 = arith.constant 128 : index
    %c32_51 = arith.constant 32 : index
    %145 = vector.load %arg8[%c128_50, %c32_51] : memref<256x64xf32, #tpu.memory_space<vmem>>, vector<32x8xf32>
    tpu.vector_store %arg8[%c128_50, %c32_51], %144 {strides = array<i32>} : memref<256x64xf32, #tpu.memory_space<vmem>>, vector<32x8xf32>,
    %146 = vector.extract_strided_slice %13 {offsets = [0, 5], sizes = [32, 1], strides = [1, 1]} : vector<32x8xf32> to vector<32x1xf32>
    %147 = vector.extract_strided_slice %12 {offsets = [5, 0], sizes = [1, 32], strides = [1, 1]} : vector<8x32xf32> to vector<1x32xf32>
    %148 = vector.broadcast %146 : vector<32x1xf32> to vector<32x32xf32>
    %149 = vector.broadcast %147 : vector<1x32xf32> to vector<32x32xf32>
    %150 = arith.addf %148, %149 : vector<32x32xf32>
    %cst_52 = arith.constant 0.000000e+00 : f32
    %151 = vector.broadcast %cst_52 : f32 to vector<32x32xf32>
    %152 = arith.cmpf oge, %150, %151 : vector<32x32xf32>
    %cst_53 = arith.constant 2.000000e-01 : f32
    %153 = vector.broadcast %cst_53 : f32 to vector<32x32xf32>
    %154 = arith.mulf %153, %150 : vector<32x32xf32>
    %155 = arith.select %152, %150, %154 : vector<32x32xi1>, vector<32x32xf32>
    %156 = arith.addf %155, %6 : vector<32x32xf32>
    %cst_54 = arith.constant dense<0xFF800000> : vector<32xf32>
    %157 = vector.multi_reduction <maximumf>, %156, %cst_54 [1] : vector<32x32xf32> to vector<32xf32>
    %158 = vector.shape_cast %157 : vector<32xf32> to vector<32x1xf32>
    %159 = vector.broadcast %158 : vector<32x1xf32> to vector<32x32xf32>
    %160 = arith.subf %156, %159 : vector<32x32xf32>
    %161 = math.exp %160 : vector<32x32xf32>
    %cst_55 = arith.constant dense<0.000000e+00> : vector<32xf32>
    %162 = vector.multi_reduction <add>, %161, %cst_55 [1] : vector<32x32xf32> to vector<32xf32>
    %163 = vector.shape_cast %162 : vector<32xf32> to vector<32x1xf32>
    %cst_56 = arith.constant 9.99999968E-21 : f32
    %164 = vector.broadcast %cst_56 : f32 to vector<32x1xf32>
    %165 = arith.maximumf %163, %164 : vector<32x1xf32>
    %166 = tpu.reciprocal %165 : vector<32x1xf32> -> vector<32x1xf32>
    %167 = vector.broadcast %166 : vector<32x1xf32> to vector<32x32xf32>
    %168 = arith.mulf %161, %167 : vector<32x32xf32>
    %c0_57 = arith.constant 0 : index
    %c160 = arith.constant 160 : index
    %169 = vector.load %arg7[%c0_57, %c160] : memref<32x256xf32, #tpu.memory_space<vmem>>, vector<32x32xf32>
    tpu.vector_store %arg7[%c0_57, %c160], %168 {strides = array<i32>} : memref<32x256xf32, #tpu.memory_space<vmem>>, vector<32x32xf32>,
    %170 = vector.extract_strided_slice %8 {offsets = [0, 40], sizes = [32, 8], strides = [1, 1]} : vector<32x64xf32> to vector<32x8xf32>
    %c160_58 = arith.constant 160 : index
    %c40 = arith.constant 40 : index
    %171 = vector.load %arg8[%c160_58, %c40] : memref<256x64xf32, #tpu.memory_space<vmem>>, vector<32x8xf32>
    tpu.vector_store %arg8[%c160_58, %c40], %170 {strides = array<i32>} : memref<256x64xf32, #tpu.memory_space<vmem>>, vector<32x8xf32>,
    %172 = vector.extract_strided_slice %13 {offsets = [0, 6], sizes = [32, 1], strides = [1, 1]} : vector<32x8xf32> to vector<32x1xf32>
    %173 = vector.extract_strided_slice %12 {offsets = [6, 0], sizes = [1, 32], strides = [1, 1]} : vector<8x32xf32> to vector<1x32xf32>
    %174 = vector.broadcast %172 : vector<32x1xf32> to vector<32x32xf32>
    %175 = vector.broadcast %173 : vector<1x32xf32> to vector<32x32xf32>
    %176 = arith.addf %174, %175 : vector<32x32xf32>
    %cst_59 = arith.constant 0.000000e+00 : f32
    %177 = vector.broadcast %cst_59 : f32 to vector<32x32xf32>
    %178 = arith.cmpf oge, %176, %177 : vector<32x32xf32>
    %cst_60 = arith.constant 2.000000e-01 : f32
    %179 = vector.broadcast %cst_60 : f32 to vector<32x32xf32>
    %180 = arith.mulf %179, %176 : vector<32x32xf32>
    %181 = arith.select %178, %176, %180 : vector<32x32xi1>, vector<32x32xf32>
    %182 = arith.addf %181, %6 : vector<32x32xf32>
    %cst_61 = arith.constant dense<0xFF800000> : vector<32xf32>
    %183 = vector.multi_reduction <maximumf>, %182, %cst_61 [1] : vector<32x32xf32> to vector<32xf32>
    %184 = vector.shape_cast %183 : vector<32xf32> to vector<32x1xf32>
    %185 = vector.broadcast %184 : vector<32x1xf32> to vector<32x32xf32>
    %186 = arith.subf %182, %185 : vector<32x32xf32>
    %187 = math.exp %186 : vector<32x32xf32>
    %cst_62 = arith.constant dense<0.000000e+00> : vector<32xf32>
    %188 = vector.multi_reduction <add>, %187, %cst_62 [1] : vector<32x32xf32> to vector<32xf32>
    %189 = vector.shape_cast %188 : vector<32xf32> to vector<32x1xf32>
    %cst_63 = arith.constant 9.99999968E-21 : f32
    %190 = vector.broadcast %cst_63 : f32 to vector<32x1xf32>
    %191 = arith.maximumf %189, %190 : vector<32x1xf32>
    %192 = tpu.reciprocal %191 : vector<32x1xf32> -> vector<32x1xf32>
    %193 = vector.broadcast %192 : vector<32x1xf32> to vector<32x32xf32>
    %194 = arith.mulf %187, %193 : vector<32x32xf32>
    %c0_64 = arith.constant 0 : index
    %c192 = arith.constant 192 : index
    %195 = vector.load %arg7[%c0_64, %c192] : memref<32x256xf32, #tpu.memory_space<vmem>>, vector<32x32xf32>
    tpu.vector_store %arg7[%c0_64, %c192], %194 {strides = array<i32>} : memref<32x256xf32, #tpu.memory_space<vmem>>, vector<32x32xf32>,
    %196 = vector.extract_strided_slice %8 {offsets = [0, 48], sizes = [32, 8], strides = [1, 1]} : vector<32x64xf32> to vector<32x8xf32>
    %c192_65 = arith.constant 192 : index
    %c48 = arith.constant 48 : index
    %197 = vector.load %arg8[%c192_65, %c48] : memref<256x64xf32, #tpu.memory_space<vmem>>, vector<32x8xf32>
    tpu.vector_store %arg8[%c192_65, %c48], %196 {strides = array<i32>} : memref<256x64xf32, #tpu.memory_space<vmem>>, vector<32x8xf32>,
    %198 = vector.extract_strided_slice %13 {offsets = [0, 7], sizes = [32, 1], strides = [1, 1]} : vector<32x8xf32> to vector<32x1xf32>
    %199 = vector.extract_strided_slice %12 {offsets = [7, 0], sizes = [1, 32], strides = [1, 1]} : vector<8x32xf32> to vector<1x32xf32>
    %200 = vector.broadcast %198 : vector<32x1xf32> to vector<32x32xf32>
    %201 = vector.broadcast %199 : vector<1x32xf32> to vector<32x32xf32>
    %202 = arith.addf %200, %201 : vector<32x32xf32>
    %cst_66 = arith.constant 0.000000e+00 : f32
    %203 = vector.broadcast %cst_66 : f32 to vector<32x32xf32>
    %204 = arith.cmpf oge, %202, %203 : vector<32x32xf32>
    %cst_67 = arith.constant 2.000000e-01 : f32
    %205 = vector.broadcast %cst_67 : f32 to vector<32x32xf32>
    %206 = arith.mulf %205, %202 : vector<32x32xf32>
    %207 = arith.select %204, %202, %206 : vector<32x32xi1>, vector<32x32xf32>
    %208 = arith.addf %207, %6 : vector<32x32xf32>
    %cst_68 = arith.constant dense<0xFF800000> : vector<32xf32>
    %209 = vector.multi_reduction <maximumf>, %208, %cst_68 [1] : vector<32x32xf32> to vector<32xf32>
    %210 = vector.shape_cast %209 : vector<32xf32> to vector<32x1xf32>
    %211 = vector.broadcast %210 : vector<32x1xf32> to vector<32x32xf32>
    %212 = arith.subf %208, %211 : vector<32x32xf32>
    %213 = math.exp %212 : vector<32x32xf32>
    %cst_69 = arith.constant dense<0.000000e+00> : vector<32xf32>
    %214 = vector.multi_reduction <add>, %213, %cst_69 [1] : vector<32x32xf32> to vector<32xf32>
    %215 = vector.shape_cast %214 : vector<32xf32> to vector<32x1xf32>
    %cst_70 = arith.constant 9.99999968E-21 : f32
    %216 = vector.broadcast %cst_70 : f32 to vector<32x1xf32>
    %217 = arith.maximumf %215, %216 : vector<32x1xf32>
    %218 = tpu.reciprocal %217 : vector<32x1xf32> -> vector<32x1xf32>
    %219 = vector.broadcast %218 : vector<32x1xf32> to vector<32x32xf32>
    %220 = arith.mulf %213, %219 : vector<32x32xf32>
    %c0_71 = arith.constant 0 : index
    %c224 = arith.constant 224 : index
    %221 = vector.load %arg7[%c0_71, %c224] : memref<32x256xf32, #tpu.memory_space<vmem>>, vector<32x32xf32>
    tpu.vector_store %arg7[%c0_71, %c224], %220 {strides = array<i32>} : memref<32x256xf32, #tpu.memory_space<vmem>>, vector<32x32xf32>,
    %222 = vector.extract_strided_slice %8 {offsets = [0, 56], sizes = [32, 8], strides = [1, 1]} : vector<32x64xf32> to vector<32x8xf32>
    %c224_72 = arith.constant 224 : index
    %c56 = arith.constant 56 : index
    %223 = vector.load %arg8[%c224_72, %c56] : memref<256x64xf32, #tpu.memory_space<vmem>>, vector<32x8xf32>
    tpu.vector_store %arg8[%c224_72, %c56], %222 {strides = array<i32>} : memref<256x64xf32, #tpu.memory_space<vmem>>, vector<32x8xf32>,
    %c0_73 = arith.constant 0 : index
    %c0_74 = arith.constant 0 : index
    %224 = vector.load %arg7[%c0_73, %c0_74] : memref<32x256xf32, #tpu.memory_space<vmem>>, vector<32x256xf32>
    %c0_75 = arith.constant 0 : index
    %c0_76 = arith.constant 0 : index
    %225 = vector.load %arg8[%c0_75, %c0_76] : memref<256x64xf32, #tpu.memory_space<vmem>>, vector<256x64xf32>
    %cst_77 = arith.constant dense<0.000000e+00> : vector<32x64xf32>
    %226 = tpu.matmul %224, %225, %cst_77 {dimension_numbers = #tpu.dot_dimension_numbers<[1], [0], [0], [1], [0, 0, 1, 1], [], []>} : vector<32x256xf32>, vector<256x64xf32>, vector<32x64xf32> -> vector<32x64xf32>
    %cst_78 = arith.constant 0.000000e+00 : f32
    %227 = vector.broadcast %cst_78 : f32 to vector<32x64xf32>
    %228 = arith.cmpf ogt, %226, %227 : vector<32x64xf32>
    %229 = math.exp %226 : vector<32x64xf32>
    %cst_79 = arith.constant 1.000000e+00 : f32
    %230 = vector.broadcast %cst_79 : f32 to vector<32x64xf32>
    %231 = arith.subf %229, %230 : vector<32x64xf32>
    %232 = arith.select %228, %226, %231 : vector<32x64xi1>, vector<32x64xf32>
    %c0_80 = arith.constant 0 : index
    %c0_81 = arith.constant 0 : index
    %233 = vector.load %arg4[%c0_80, %c0_81] : memref<64x128xf32, #tpu.memory_space<vmem>>, vector<64x128xf32>
    %cst_82 = arith.constant dense<0.000000e+00> : vector<32x128xf32>
    %234 = tpu.matmul %232, %233, %cst_82 {dimension_numbers = #tpu.dot_dimension_numbers<[1], [0], [0], [1], [0, 0, 1, 1], [], []>} : vector<32x64xf32>, vector<64x128xf32>, vector<32x128xf32> -> vector<32x128xf32>
    %c0_83 = arith.constant 0 : index
    %c0_84 = arith.constant 0 : index
    %235 = vector.load %arg5[%c0_83, %c0_84] : memref<128x2xf32, #tpu.memory_space<vmem>>, vector<128x2xf32>
    %cst_85 = arith.constant dense<0.000000e+00> : vector<32x2xf32>
    %236 = tpu.matmul %234, %235, %cst_85 {dimension_numbers = #tpu.dot_dimension_numbers<[1], [0], [0], [1], [0, 0, 1, 1], [], []>} : vector<32x128xf32>, vector<128x2xf32>, vector<32x2xf32> -> vector<32x2xf32>
    %237 = vector.extract_strided_slice %236 {offsets = [0, 1], sizes = [32, 1], strides = [1, 1]} : vector<32x2xf32> to vector<32x1xf32>
    %238 = vector.extract_strided_slice %236 {offsets = [0, 0], sizes = [32, 1], strides = [1, 1]} : vector<32x2xf32> to vector<32x1xf32>
    %239 = tpu.transpose %238, [1, 0] : vector<32x1xf32> -> vector<1x32xf32>
    %240 = vector.broadcast %237 : vector<32x1xf32> to vector<32x32xf32>
    %241 = vector.broadcast %239 : vector<1x32xf32> to vector<32x32xf32>
    %242 = arith.addf %240, %241 : vector<32x32xf32>
    %cst_86 = arith.constant 0.000000e+00 : f32
    %243 = vector.broadcast %cst_86 : f32 to vector<32x32xf32>
    %244 = arith.cmpf oge, %242, %243 : vector<32x32xf32>
    %cst_87 = arith.constant 2.000000e-01 : f32
    %245 = vector.broadcast %cst_87 : f32 to vector<32x32xf32>
    %246 = arith.mulf %245, %242 : vector<32x32xf32>
    %247 = arith.select %244, %242, %246 : vector<32x32xi1>, vector<32x32xf32>
    %248 = arith.addf %247, %6 : vector<32x32xf32>
    %cst_88 = arith.constant dense<0xFF800000> : vector<32xf32>
    %249 = vector.multi_reduction <maximumf>, %248, %cst_88 [1] : vector<32x32xf32> to vector<32xf32>
    %250 = vector.shape_cast %249 : vector<32xf32> to vector<32x1xf32>
    %251 = vector.broadcast %250 : vector<32x1xf32> to vector<32x32xf32>
    %252 = arith.subf %248, %251 : vector<32x32xf32>
    %253 = math.exp %252 : vector<32x32xf32>
    %cst_89 = arith.constant dense<0.000000e+00> : vector<32xf32>
    %254 = vector.multi_reduction <add>, %253, %cst_89 [1] : vector<32x32xf32> to vector<32xf32>
    %255 = vector.shape_cast %254 : vector<32xf32> to vector<32x1xf32>
    %cst_90 = arith.constant 9.99999968E-21 : f32
    %256 = vector.broadcast %cst_90 : f32 to vector<32x1xf32>
    %257 = arith.maximumf %255, %256 : vector<32x1xf32>
    %258 = tpu.reciprocal %257 : vector<32x1xf32> -> vector<32x1xf32>
    %259 = vector.broadcast %258 : vector<32x1xf32> to vector<32x32xf32>
    %260 = arith.mulf %253, %259 : vector<32x32xf32>
    %cst_91 = arith.constant dense<0.000000e+00> : vector<32x128xf32>
    %261 = tpu.matmul %260, %234, %cst_91 {dimension_numbers = #tpu.dot_dimension_numbers<[1], [0], [0], [1], [0, 0, 1, 1], [], []>} : vector<32x32xf32>, vector<32x128xf32>, vector<32x128xf32> -> vector<32x128xf32>
    %c0_92 = arith.constant 0 : index
    %c0_93 = arith.constant 0 : index
    %262 = vector.load %arg6[%c0_92, %c0_93] : memref<32x128xf32, #tpu.memory_space<vmem>>, vector<32x128xf32>
    tpu.vector_store %arg6[%c0_92, %c0_93], %261 {strides = array<i32>} : memref<32x128xf32, #tpu.memory_space<vmem>>, vector<32x128xf32>,
    return
  }
}

</mosaic_0001>

<llo_original>
// kernel: gat_forward_pallas.1
$region0: #{gat_forward_pallas.1}
  #allocation0 [shape = 'u32[]', space=smem, size = 0x4, offset = 0x4, fixed_abs, tag = 'smem constant byte address 0x4 - core index']
  #allocation1 [shape = 'u32[144,128]{1,0:T(1,128)}', space=vmem, size = 0x12000, scoped, tag = 'internal scratch']
  #allocation2 [shape = 'f32[32,256]{1,0:T(8,128)}', space=vmem, size = 0x8000, scoped, tag = 'scratch operand']
  #allocation3 [shape = 'f32[256,64]{1,0:T(8,128)}', space=vmem, size = 0x20000, scoped, tag = 'scratch operand']
  %s0 = inlined_call_operand.vmem [shape: f32[32,16], index: 0, kind: input, shape index: {}]
  %s1 = inlined_call_operand.vmem [shape: f32[32,32], index: 1, kind: input, shape index: {}]
  %s2 = inlined_call_operand.vmem [shape: f32[16,64], index: 2, kind: input, shape index: {}]
  %s3 = inlined_call_operand.vmem [shape: f32[64,16], index: 3, kind: input, shape index: {}]
  %s4 = inlined_call_operand.vmem [shape: f32[64,128], index: 4, kind: input, shape index: {}]
  %s5 = inlined_call_operand.vmem [shape: f32[128,2], index: 5, kind: input, shape index: {}]
  %s6 = inlined_call_operand.vmem [shape: f32[32,128], index: 6, kind: output, shape index: {}]
  %s7 = sld [smem:[#allocation0]]
  $region34: #{gat_forward_pallas.1} parent=0
    _
  %s9 = ssub.s32 1, %s7
  %s10 = scalar_select 0, %s9, %s7
  // Predicated region
  $region2: #{gat_forward_pallas.1} parent=0 // pred_check
    _
  $region3: #{gat_forward_pallas.1} parent=0 // pred_check_branch
    %12 = sbr.rel (0) target = $region5
  $region4: #{gat_forward_pallas.1} parent=0 // pred_region
    _
  $region5: #{gat_forward_pallas.1} parent=0 // pred_fallthru
    _
  // Predicated region
  $region6: #{gat_forward_pallas.1} parent=0 // pred_check
    _
  $region7: #{gat_forward_pallas.1} parent=0 // pred_check_branch
    %14 = sbr.rel (0) target = $region9
  $region8: #{gat_forward_pallas.1} parent=0 // pred_region
    _
  $region9: #{gat_forward_pallas.1} parent=0 // pred_fallthru
    _
  // Predicated region
  $region10: #{gat_forward_pallas.1} parent=0 // pred_check
    _
  $region11: #{gat_forward_pallas.1} parent=0 // pred_check_branch
    %16 = sbr.rel (0) target = $region13
  $region12: #{gat_forward_pallas.1} parent=0 // pred_region
    _
  $region13: #{gat_forward_pallas.1} parent=0 // pred_fallthru
    _
  // Predicated region
  $region14: #{gat_forward_pallas.1} parent=0 // pred_check
    _
  $region15: #{gat_forward_pallas.1} parent=0 // pred_check_branch
    %18 = sbr.rel (0) target = $region17
  $region16: #{gat_forward_pallas.1} parent=0 // pred_region
    _
  $region17: #{gat_forward_pallas.1} parent=0 // pred_fallthru
    _
  // Predicated region
  $region18: #{gat_forward_pallas.1} parent=0 // pred_check
    _
  $region19: #{gat_forward_pallas.1} parent=0 // pred_check_branch
    %20 = sbr.rel (0) target = $region21
  $region20: #{gat_forward_pallas.1} parent=0 // pred_region
    _
  $region21: #{gat_forward_pallas.1} parent=0 // pred_fallthru
    _
  // Predicated region
  $region22: #{gat_forward_pallas.1} parent=0 // pred_check
    _
  $region23: #{gat_forward_pallas.1} parent=0 // pred_check_branch
    %22 = sbr.rel (0) target = $region25
  $region24: #{gat_forward_pallas.1} parent=0 // pred_region
    _
  $region25: #{gat_forward_pallas.1} parent=0 // pred_fallthru
    _
  %v23 = vld [vmem:[%s0] sm:$0xff]
  %v24 = vld [vmem:[%s0 + $0x8] sm:$0xff]
  %v25 = vld [vmem:[%s0 + $0x10] sm:$0xff]
  %v26 = vld [vmem:[%s0 + $0x18] sm:$0xff]
  %v27 = vld [vmem:[%s1] sm:$0xff]
  %v28 = vld [vmem:[%s1 + $0x8] sm:$0xff]
  %v29 = vld [vmem:[%s1 + $0x10] sm:$0xff]
  %v30 = vld [vmem:[%s1 + $0x18] sm:$0xff]
  %vm31 = vcmp.gt.f32.partialorder %v27, 0.0
  %vm32 = vcmp.gt.f32.partialorder %v28, 0.0
  %vm33 = vcmp.gt.f32.partialorder %v29, 0.0
  %vm34 = vcmp.gt.f32.partialorder %v30, 0.0
  %v35 = vsel %vm31, 0.0, -1e+30
  %v36 = vsel %vm32, 0.0, -1e+30
  %v37 = vsel %vm33, 0.0, -1e+30
  %v38 = vsel %vm34, 0.0, -1e+30
  %v39 = vld [vmem:[%s2] sm:$0xff]
  %v40 = vld [vmem:[%s2 + $0x8] sm:$0xff]
  %vm41 = vcmask 130048
  %v43 = vsel %vm41, %v23, 0
  %v46 = vsel %vm41, %v24, 0
  %v49 = vsel %vm41, %v25, 0
  %v52 = vsel %vm41, %v26, 0
  %54 = vmatprep.subr.mxu0 0.0
  %55 = vmatpush1.msra.mxu0 %v39
  %56 = vmatprep.subr.mxu0 0.0
  %57 = vmatpush1.msra.mxu0 %v40
  %58 = vmatprep.subr.mxu0 0.0
  %59 = vmatpush1.msra.mxu0 0.0
  %60 = vmatprep.subr.mxu0 0.0
  %61 = vmatpush1.msra.mxu0 0.0
  %62 = vmatprep.subr.mxu0 0.0
  %63 = vmatpush1.msra.mxu0 0.0
  %64 = vmatprep.subr.mxu0 0.0
  %65 = vmatpush1.msra.mxu0 0.0
  %66 = vmatprep.subr.mxu0 0.0
  %67 = vmatpush1.msra.mxu0 0.0
  %68 = vmatprep.subr.mxu0 0.0
  %69 = vmatpush1.msra.mxu0 0.0
  %70 = vmatprep.subr.mxu0 0.0
  %71 = vmatpush1.msra.mxu0 0.0
  %72 = vmatprep.subr.mxu0 0.0
  %73 = vmatpush1.msra.mxu0 0.0
  %74 = vmatprep.subr.mxu0 0.0
  %75 = vmatpush1.msra.mxu0 0.0
  %76 = vmatprep.subr.mxu0 0.0
  %77 = vmatpush1.msra.mxu0 0.0
  %78 = vmatprep.subr.mxu0 0.0
  %79 = vmatpush1.msra.mxu0 0.0
  %80 = vmatprep.subr.mxu0 0.0
  %81 = vmatpush1.msra.mxu0 0.0
  %82 = vmatprep.subr.mxu0 0.0
  %83 = vmatpush1.msra.mxu0 0.0
  %84 = vmatprep.subr.mxu0 0.0
  %85 = vmatpush1.msra.mxu0 0.0
  %86 = vmatprep.subr.mxu0 0.0
  %87 = vmatpush1.msra.mxu0 0.0
  %88 = vmatprep.subr.mxu0 0.0
  %89 = vmatpush1.msra.mxu0 0.0
  %90 = vmatprep.subr.mxu0 0.0
  %91 = vmatpush1.msra.mxu0 0.0
  %92 = vmatprep.subr.mxu0 0.0
  %93 = vmatpush1.msra.mxu0 0.0
  %94 = vmatprep.subr.mxu0 0.0
  %95 = vmatpush1.msra.mxu0 0.0
  %96 = vmatprep.subr.mxu0 0.0
  %97 = vmatpush1.msra.mxu0 0.0
  %98 = vmatprep.subr.mxu0 0.0
  %99 = vmatpush1.msra.mxu0 0.0
  %100 = vmatprep.subr.mxu0 0.0
  %101 = vmatpush1.msra.mxu0 0.0
  %102 = vmatprep.subr.mxu0 0.0
  %103 = vmatpush1.msra.mxu0 0.0
  %104 = vmatprep.subr.mxu0 0.0
  %105 = vmatpush1.msra.mxu0 0.0
  %106 = vmatprep.subr.mxu0 0.0
  %107 = vmatpush1.msra.mxu0 0.0
  %108 = vmatprep.subr.mxu0 0.0
  %109 = vmatpush1.msra.mxu0 0.0
  %110 = vmatprep.subr.mxu0 0.0
  %111 = vmatpush1.msra.mxu0 0.0
  %112 = vmatprep.subr.mxu0 0.0
  %113 = vmatpush1.msra.mxu0 0.0
  %114 = vmatprep.subr.mxu0 0.0
  %115 = vmatpush1.msra.mxu0 0.0
  %116 = vmatprep.subr.mxu0 0.0
  %117 = vmatpush1.msra.mxu0 0.0
  %118 = vmatprep.mubr.f32.mxu0 0.0
  %119 = vmatmul.mubr.f32.gmra.mrb[0].mxu0 %v43
  %v120 = vpop.f32.mrb[0].mxu0
  %v121 = vadd.f32 0.0, %v120
  %v122 = vpop.f32.mrb[0].mxu0
  %123 = vmatprep.mubr.f32.mxu0 0.0
  %124 = vmatmul.mubr.f32.gmra.mrb[0].mxu0 %v46
  %v125 = vpop.f32.mrb[0].mxu0
  %v126 = vadd.f32 0.0, %v125
  %v127 = vpop.f32.mrb[0].mxu0
  %128 = vmatprep.mubr.f32.mxu0 0.0
  %129 = vmatmul.mubr.f32.gmra.mrb[0].mxu0 %v49
  %v130 = vpop.f32.mrb[0].mxu0
  %v131 = vadd.f32 0.0, %v130
  %v132 = vpop.f32.mrb[0].mxu0
  %133 = vmatprep.mubr.f32.mxu0 0.0
  %134 = vmatmul.mubr.f32.gmra.mrb[0].mxu0 %v52
  %v135 = vpop.f32.mrb[0].mxu0
  %v136 = vadd.f32 0.0, %v135
  %v137 = vpop.f32.mrb[0].mxu0
  %138 = vdwg.mxu0
  %v139 = vld [vmem:[%s3] sm:$0xff]
  %v140 = vld [vmem:[%s3 + $0x8] sm:$0xff]
  %v141 = vld [vmem:[%s3 + $0x10] sm:$0xff]
  %v142 = vld [vmem:[%s3 + $0x18] sm:$0xff]
  %v143 = vld [vmem:[%s3 + $0x20] sm:$0xff]
  %v144 = vld [vmem:[%s3 + $0x28] sm:$0xff]
  %v145 = vld [vmem:[%s3 + $0x30] sm:$0xff]
  %v146 = vld [vmem:[%s3 + $0x38] sm:$0xff]
  %vm147 = vcmask 523264
  %v149 = vsel %vm147, %v121, 0
  %v152 = vsel %vm147, %v126, 0
  %v155 = vsel %vm147, %v131, 0
  %v158 = vsel %vm147, %v136, 0
  %160 = vmatprep.subr.mxu0 0.0
  %161 = vmatpush1.msra.mxu0 %v139
  %162 = vmatprep.subr.mxu0 0.0
  %163 = vmatpush1.msra.mxu0 %v140
  %164 = vmatprep.subr.mxu0 0.0
  %165 = vmatpush1.msra.mxu0 %v141
  %166 = vmatprep.subr.mxu0 0.0
  %167 = vmatpush1.msra.mxu0 %v142
  %168 = vmatprep.subr.mxu0 0.0
  %169 = vmatpush1.msra.mxu0 %v143
  %170 = vmatprep.subr.mxu0 0.0
  %171 = vmatpush1.msra.mxu0 %v144
  %172 = vmatprep.subr.mxu0 0.0
  %173 = vmatpush1.msra.mxu0 %v145
  %174 = vmatprep.subr.mxu0 0.0
  %175 = vmatpush1.msra.mxu0 %v146
  %176 = vmatprep.subr.mxu0 0.0
  %177 = vmatpush1.msra.mxu0 0.0
  %178 = vmatprep.subr.mxu0 0.0
  %179 = vmatpush1.msra.mxu0 0.0
  %180 = vmatprep.subr.mxu0 0.0
  %181 = vmatpush1.msra.mxu0 0.0
  %182 = vmatprep.subr.mxu0 0.0
  %183 = vmatpush1.msra.mxu0 0.0
  %184 = vmatprep.subr.mxu0 0.0
  %185 = vmatpush1.msra.mxu0 0.0
  %186 = vmatprep.subr.mxu0 0.0
  %187 = vmatpush1.msra.mxu0 0.0
  %188 = vmatprep.subr.mxu0 0.0
  %189 = vmatpush1.msra.mxu0 0.0
  %190 = vmatprep.subr.mxu0 0.0
  %191 = vmatpush1.msra.mxu0 0.0
  %192 = vmatprep.subr.mxu0 0.0
  %193 = vmatpush1.msra.mxu0 0.0
  %194 = vmatprep.subr.mxu0 0.0
  %195 = vmatpush1.msra.mxu0 0.0
  %196 = vmatprep.subr.mxu0 0.0
  %197 = vmatpush1.msra.mxu0 0.0
  %198 = vmatprep.subr.mxu0 0.0
  %199 = vmatpush1.msra.mxu0 0.0
  %200 = vmatprep.subr.mxu0 0.0
  %201 = vmatpush1.msra.mxu0 0.0
  %202 = vmatprep.subr.mxu0 0.0
  %203 = vmatpush1.msra.mxu0 0.0
  %204 = vmatprep.subr.mxu0 0.0
  %205 = vmatpush1.msra.mxu0 0.0
  %206 = vmatprep.subr.mxu0 0.0
  %207 = vmatpush1.msra.mxu0 0.0
  %208 = vmatprep.subr.mxu0 0.0
  %209 = vmatpush1.msra.mxu0 0.0
  %210 = vmatprep.subr.mxu0 0.0
  %211 = vmatpush1.msra.mxu0 0.0
  %212 = vmatprep.subr.mxu0 0.0
  %213 = vmatpush1.msra.mxu0 0.0
  %214 = vmatprep.subr.mxu0 0.0
  %215 = vmatpush1.msra.mxu0 0.0
  %216 = vmatprep.subr.mxu0 0.0
  %217 = vmatpush1.msra.mxu0 0.0
  %218 = vmatprep.subr.mxu0 0.0
  %219 = vmatpush1.msra.mxu0 0.0
  %220 = vmatprep.subr.mxu0 0.0
  %221 = vmatpush1.msra.mxu0 0.0
  %222 = vmatprep.subr.mxu0 0.0
  %223 = vmatpush1.msra.mxu0 0.0
  %224 = vmatprep.mubr.f32.mxu0 0.0
  %225 = vmatmul.mubr.f32.gmra.mrb[0].mxu0 %v149
  %v226 = vpop.f32.mrb[0].mxu0
  %v227 = vadd.f32 0.0, %v226
  %v228 = vpop.f32.mrb[0].mxu0
  %229 = vmatprep.mubr.f32.mxu0 0.0
  %230 = vmatmul.mubr.f32.gmra.mrb[0].mxu0 %v152
  %v231 = vpop.f32.mrb[0].mxu0
  %v232 = vadd.f32 0.0, %v231
  %v233 = vpop.f32.mrb[0].mxu0
  %234 = vmatprep.mubr.f32.mxu0 0.0
  %235 = vmatmul.mubr.f32.gmra.mrb[0].mxu0 %v155
  %v236 = vpop.f32.mrb[0].mxu0
  %v237 = vadd.f32 0.0, %v236
  %v238 = vpop.f32.mrb[0].mxu0
  %239 = vmatprep.mubr.f32.mxu0 0.0
  %240 = vmatmul.mubr.f32.gmra.mrb[0].mxu0 %v158
  %v241 = vpop.f32.mrb[0].mxu0
  %v242 = vadd.f32 0.0, %v241
  %v243 = vpop.f32.mrb[0].mxu0
  %244 = vdwg.mxu0
  %245 = vxpose.xlu0.b32.start [1/16] %v227, 128
  %246 = vxpose.xlu0.b32.cont [2/16] %v232, 128
  %247 = vxpose.xlu0.b32.cont [3/16] %v237, 128
  %248 = vxpose.xlu0.b32.cont [4/16] %v242, 128
  %249 = vxpose.xlu0.b32.cont [5/16] 0.0, 128
  %250 = vxpose.xlu0.b32.cont [6/16] 0.0, 128
  %251 = vxpose.xlu0.b32.cont [7/16] 0.0, 128
  %252 = vxpose.xlu0.b32.cont [8/16] 0.0, 128
  %253 = vxpose.xlu0.b32.cont [9/16] 0.0, 128
  %254 = vxpose.xlu0.b32.cont [10/16] 0.0, 128
  %255 = vxpose.xlu0.b32.cont [11/16] 0.0, 128
  %256 = vxpose.xlu0.b32.cont [12/16] 0.0, 128
  %257 = vxpose.xlu0.b32.cont [13/16] 0.0, 128
  %258 = vxpose.xlu0.b32.cont [14/16] 0.0, 128
  %259 = vxpose.xlu0.b32.cont [15/16] 0.0, 128
  %260 = vxpose.xlu0.b32.end [16/16] 0.0, 128
  %v261 = vpop.trf.xlu0
  %v262 = vpop.trf.xlu0
  %v263 = vpop.trf.xlu0
  %v264 = vpop.trf.xlu0
  %v265 = vpop.trf.xlu0
  %v266 = vpop.trf.xlu0
  %v267 = vpop.trf.xlu0
  %v268 = vpop.trf.xlu0
  %v269 = vpop.trf.xlu0
  %v270 = vpop.trf.xlu0
  %v271 = vpop.trf.xlu0
  %v272 = vpop.trf.xlu0
  %v273 = vpop.trf.xlu0
  %v274 = vpop.trf.xlu0
  %v275 = vpop.trf.xlu0
  %v276 = vpop.trf.xlu0
  %277 = vst.msk [vmem:[#allocation3] sm:$0xff] %vm147, 0.0
  %278 = vst.msk [vmem:[#allocation3 + $0x8] sm:$0xff] %vm147, 0.0
  %279 = vst.msk [vmem:[#allocation3 + $0x10] sm:$0xff] %vm147, 0.0
  %280 = vst.msk [vmem:[#allocation3 + $0x18] sm:$0xff] %vm147, 0.0
  %281 = vst.msk [vmem:[#allocation3 + $0x20] sm:$0xff] %vm147, 0.0
  %282 = vst.msk [vmem:[#allocation3 + $0x28] sm:$0xff] %vm147, 0.0
  %283 = vst.msk [vmem:[#allocation3 + $0x30] sm:$0xff] %vm147, 0.0
  %284 = vst.msk [vmem:[#allocation3 + $0x38] sm:$0xff] %vm147, 0.0
  %285 = vst.msk [vmem:[#allocation3 + $0x40] sm:$0xff] %vm147, 0.0
  %286 = vst.msk [vmem:[#allocation3 + $0x48] sm:$0xff] %vm147, 0.0
  %287 = vst.msk [vmem:[#allocation3 + $0x50] sm:$0xff] %vm147, 0.0
  %288 = vst.msk [vmem:[#allocation3 + $0x58] sm:$0xff] %vm147, 0.0
  %289 = vst.msk [vmem:[#allocation3 + $0x60] sm:$0xff] %vm147, 0.0
  %290 = vst.msk [vmem:[#allocation3 + $0x68] sm:$0xff] %vm147, 0.0
  %291 = vst.msk [vmem:[#allocation3 + $0x70] sm:$0xff] %vm147, 0.0
  %292 = vst.msk [vmem:[#allocation3 + $0x78] sm:$0xff] %vm147, 0.0
  %293 = vst.msk [vmem:[#allocation3 + $0x80] sm:$0xff] %vm147, 0.0
  %294 = vst.msk [vmem:[#allocation3 + $0x88] sm:$0xff] %vm147, 0.0
  %295 = vst.msk [vmem:[#allocation3 + $0x90] sm:$0xff] %vm147, 0.0
  %296 = vst.msk [vmem:[#allocation3 + $0x98] sm:$0xff] %vm147, 0.0
  %297 = vst.msk [vmem:[#allocation3 + $0xa0] sm:$0xff] %vm147, 0.0
  %298 = vst.msk [vmem:[#allocation3 + $0xa8] sm:$0xff] %vm147, 0.0
  %299 = vst.msk [vmem:[#allocation3 + $0xb0] sm:$0xff] %vm147, 0.0
  %300 = vst.msk [vmem:[#allocation3 + $0xb8] sm:$0xff] %vm147, 0.0
  %301 = vst.msk [vmem:[#allocation3 + $0xc0] sm:$0xff] %vm147, 0.0
  %302 = vst.msk [vmem:[#allocation3 + $0xc8] sm:$0xff] %vm147, 0.0
  %303 = vst.msk [vmem:[#allocation3 + $0xd0] sm:$0xff] %vm147, 0.0
  %304 = vst.msk [vmem:[#allocation3 + $0xd8] sm:$0xff] %vm147, 0.0
  %305 = vst.msk [vmem:[#allocation3 + $0xe0] sm:$0xff] %vm147, 0.0
  %306 = vst.msk [vmem:[#allocation3 + $0xe8] sm:$0xff] %vm147, 0.0
  %307 = vst.msk [vmem:[#allocation3 + $0xf0] sm:$0xff] %vm147, 0.0
  %308 = vst.msk [vmem:[#allocation3 + $0xf8] sm:$0xff] %vm147, 0.0
  %310 = vset.pattern.permute.xlu0 8
  %311 = vperm.xlu0 %310, %v227
  %v312 = vpop.permute.xlu0 %311
  %315 = vset.pattern.permute.xlu0 8
  %316 = vperm.xlu0 %315, %v232
  %v317 = vpop.permute.xlu0 %316
  %320 = vset.pattern.permute.xlu0 8
  %321 = vperm.xlu0 %320, %v237
  %v322 = vpop.permute.xlu0 %321
  %325 = vset.pattern.permute.xlu0 8
  %326 = vperm.xlu0 %325, %v242
  %v327 = vpop.permute.xlu0 %326
  %v329 = vlaneseq
  %v330 = vshrl.u32 %v329, 7
  %v331 = vsub.s32 0, %v330
  %v332 = vrot.slane %v261, %v331
  %v333 = vadd.f32 %v312, %v332
  %v334 = vadd.f32 %v317, %v332
  %v335 = vadd.f32 %v322, %v332
  %v336 = vadd.f32 %v327, %v332
  %vm337 = vcmp.ge.f32.partialorder %v333, 0.0
  %vm338 = vcmp.ge.f32.partialorder %v334, 0.0
  %vm339 = vcmp.ge.f32.partialorder %v335, 0.0
  %vm340 = vcmp.ge.f32.partialorder %v336, 0.0
  %v341 = vmul.f32 %v333, 0.2
  %v342 = vmul.f32 %v334, 0.2
  %v343 = vmul.f32 %v335, 0.2
  %v344 = vmul.f32 %v336, 0.2
  %v345 = vsel %vm337, %v333, %v341
  %v346 = vsel %vm338, %v334, %v342
  %v347 = vsel %vm339, %v335, %v343
  %v348 = vsel %vm340, %v336, %v344
  %v349 = vadd.f32 %v345, %v35
  %v350 = vadd.f32 %v346, %v36
  %v351 = vadd.f32 %v347, %v37
  %v352 = vadd.f32 %v348, %v38
  %vm353 = vcmask 261120
  %v354 = vsel %vm353, %v349, -inf
  %355 = vmax.xlane.f32.xlu0 %v354
  %v356 = vpop.xlane.xlu0 %355
  %v357 = vsel %vm353, %v350, -inf
  %358 = vmax.xlane.f32.xlu0 %v357
  %v359 = vpop.xlane.xlu0 %358
  %v360 = vsel %vm353, %v351, -inf
  %361 = vmax.xlane.f32.xlu0 %v360
  %v362 = vpop.xlane.xlu0 %361
  %v363 = vsel %vm353, %v352, -inf
  %364 = vmax.xlane.f32.xlu0 %v363
  %v365 = vpop.xlane.xlu0 %364
  %v366 = vsub.f32 %v349, %v356
  %v367 = vsub.f32 %v350, %v359
  %v368 = vsub.f32 %v351, %v362
  %v369 = vsub.f32 %v352, %v365
  %v370 = vmul.f32 %v366, 1.442695
  %v371 = vpow.pop %v370
  %v372 = vmul.f32 %v367, 1.442695
  %v373 = vpow.pop %v372
  %v374 = vmul.f32 %v368, 1.442695
  %v375 = vpow.pop %v374
  %v376 = vmul.f32 %v369, 1.442695
  %v377 = vpow.pop %v376
  %v378 = vsel %vm353, %v371, 0.0
  %379 = vadd.xlane.f32.xlu0 %v378
  %v380 = vpop.xlane.xlu0 %379
  %v381 = vsel %vm353, %v373, 0.0
  %382 = vadd.xlane.f32.xlu0 %v381
  %v383 = vpop.xlane.xlu0 %382
  %v384 = vsel %vm353, %v375, 0.0
  %385 = vadd.xlane.f32.xlu0 %v384
  %v386 = vpop.xlane.xlu0 %385
  %v387 = vsel %vm353, %v377, 0.0
  %388 = vadd.xlane.f32.xlu0 %v387
  %v389 = vpop.xlane.xlu0 %388
  %v390 = vmax.f32 %v380, 1e-20
  %v391 = vmax.f32 %v383, 1e-20
  %v392 = vmax.f32 %v386, 1e-20
  %v393 = vmax.f32 %v389, 1e-20
  %v394 = vrcp.pop %v390
  %v395 = vrcp.pop %v391
  %v396 = vrcp.pop %v392
  %v397 = vrcp.pop %v393
  %v398 = vmul.f32 %v371, %v394
  %v399 = vmul.f32 %v373, %v395
  %v400 = vmul.f32 %v375, %v396
  %v401 = vmul.f32 %v377, %v397
  %402 = vst.msk [vmem:[#allocation2] sm:$0xff] %vm353, %v398
  %403 = vst.msk [vmem:[#allocation2 + $0x10] sm:$0xff] %vm353, %v399
  %404 = vst.msk [vmem:[#allocation2 + $0x20] sm:$0xff] %vm353, %v400
  %405 = vst.msk [vmem:[#allocation2 + $0x30] sm:$0xff] %vm353, %v401
  %vm406 = vcmask 64512
  %407 = vst.msk [vmem:[#allocation3] sm:$0xff] %vm406, %v121
  %408 = vst.msk [vmem:[#allocation3 + $0x8] sm:$0xff] %vm406, %v126
  %409 = vst.msk [vmem:[#allocation3 + $0x10] sm:$0xff] %vm406, %v131
  %410 = vst.msk [vmem:[#allocation3 + $0x18] sm:$0xff] %vm406, %v136
  %411 = vset.pattern.permute.xlu0 9
  %412 = vperm.xlu0 %411, %v227
  %v413 = vpop.permute.xlu0 %412
  %415 = vset.pattern.permute.xlu0 9
  %416 = vperm.xlu0 %415, %v232
  %v417 = vpop.permute.xlu0 %416
  %419 = vset.pattern.permute.xlu0 9
  %420 = vperm.xlu0 %419, %v237
  %v421 = vpop.permute.xlu0 %420
  %423 = vset.pattern.permute.xlu0 9
  %424 = vperm.xlu0 %423, %v242
  %v425 = vpop.permute.xlu0 %424
  %v427 = vlaneseq
  %v428 = vshrl.u32 %v427, 7
  %v429 = vsub.s32 1, %v428
  %v430 = vrot.slane %v261, %v429
  %v431 = vadd.f32 %v413, %v430
  %v432 = vadd.f32 %v417, %v430
  %v433 = vadd.f32 %v421, %v430
  %v434 = vadd.f32 %v425, %v430
  %vm435 = vcmp.ge.f32.partialorder %v431, 0.0
  %vm436 = vcmp.ge.f32.partialorder %v432, 0.0
  %vm437 = vcmp.ge.f32.partialorder %v433, 0.0
  %vm438 = vcmp.ge.f32.partialorder %v434, 0.0
  %v439 = vmul.f32 %v431, 0.2
  %v440 = vmul.f32 %v432, 0.2
  %v441 = vmul.f32 %v433, 0.2
  %v442 = vmul.f32 %v434, 0.2
  %v443 = vsel %vm435, %v431, %v439
  %v444 = vsel %vm436, %v432, %v440
  %v445 = vsel %vm437, %v433, %v441
  %v446 = vsel %vm438, %v434, %v442
  %v447 = vadd.f32 %v443, %v35
  %v448 = vadd.f32 %v444, %v36
  %v449 = vadd.f32 %v445, %v37
  %v450 = vadd.f32 %v446, %v38
  %v451 = vsel %vm353, %v447, -inf
  %452 = vmax.xlane.f32.xlu0 %v451
  %v453 = vpop.xlane.xlu0 %452
  %v454 = vsel %vm353, %v448, -inf
  %455 = vmax.xlane.f32.xlu0 %v454
  %v456 = vpop.xlane.xlu0 %455
  %v457 = vsel %vm353, %v449, -inf
  %458 = vmax.xlane.f32.xlu0 %v457
  %v459 = vpop.xlane.xlu0 %458
  %v460 = vsel %vm353, %v450, -inf
  %461 = vmax.xlane.f32.xlu0 %v460
  %v462 = vpop.xlane.xlu0 %461
  %v463 = vsub.f32 %v447, %v453
  %v464 = vsub.f32 %v448, %v456
  %v465 = vsub.f32 %v449, %v459
  %v466 = vsub.f32 %v450, %v462
  %v467 = vmul.f32 %v463, 1.442695
  %v468 = vpow.pop %v467
  %v469 = vmul.f32 %v464, 1.442695
  %v470 = vpow.pop %v469
  %v471 = vmul.f32 %v465, 1.442695
  %v472 = vpow.pop %v471
  %v473 = vmul.f32 %v466, 1.442695
  %v474 = vpow.pop %v473
  %v475 = vsel %vm353, %v468, 0.0
  %476 = vadd.xlane.f32.xlu0 %v475
  %v477 = vpop.xlane.xlu0 %476
  %v478 = vsel %vm353, %v470, 0.0
  %479 = vadd.xlane.f32.xlu0 %v478
  %v480 = vpop.xlane.xlu0 %479
  %v481 = vsel %vm353, %v472, 0.0
  %482 = vadd.xlane.f32.xlu0 %v481
  %v483 = vpop.xlane.xlu0 %482
  %v484 = vsel %vm353, %v474, 0.0
  %485 = vadd.xlane.f32.xlu0 %v484
  %v486 = vpop.xlane.xlu0 %485
  %v487 = vmax.f32 %v477, 1e-20
  %v488 = vmax.f32 %v480, 1e-20
  %v489 = vmax.f32 %v483, 1e-20
  %v490 = vmax.f32 %v486, 1e-20
  %v491 = vrcp.pop %v487
  %v492 = vrcp.pop %v488
  %v493 = vrcp.pop %v489
  %v494 = vrcp.pop %v490
  %v495 = vmul.f32 %v468, %v491
  %v496 = vmul.f32 %v470, %v492
  %v497 = vmul.f32 %v472, %v493
  %v498 = vmul.f32 %v474, %v494
  %503 = vrot.lane.b32.xlu0 %v495, 32
  %v504 = vpop.permute.xlu0 %503
  %505 = vrot.lane.b32.xlu0 %v496, 32
  %v506 = vpop.permute.xlu0 %505
  %507 = vrot.lane.b32.xlu0 %v497, 32
  %v508 = vpop.permute.xlu0 %507
  %509 = vrot.lane.b32.xlu0 %v498, 32
  %v510 = vpop.permute.xlu0 %509
  %vm515 = vcmask 523520
  %516 = vst.msk [vmem:[#allocation2] sm:$0xff] %vm515, %v504
  %517 = vst.msk [vmem:[#allocation2 + $0x10] sm:$0xff] %vm515, %v506
  %518 = vst.msk [vmem:[#allocation2 + $0x20] sm:$0xff] %vm515, %v508
  %519 = vst.msk [vmem:[#allocation2 + $0x30] sm:$0xff] %vm515, %v510
  %vm520 = vcmask 130112
  %521 = vst.msk [vmem:[#allocation3 + $0x20] sm:$0xff] %vm520, %v121
  %522 = vst.msk [vmem:[#allocation3 + $0x28] sm:$0xff] %vm520, %v126
  %523 = vst.msk [vmem:[#allocation3 + $0x30] sm:$0xff] %vm520, %v131
  %524 = vst.msk [vmem:[#allocation3 + $0x38] sm:$0xff] %vm520, %v136
  %525 = vset.pattern.permute.xlu0 10
  %526 = vperm.xlu0 %525, %v227
  %v527 = vpop.permute.xlu0 %526
  %529 = vset.pattern.permute.xlu0 10
  %530 = vperm.xlu0 %529, %v232
  %v531 = vpop.permute.xlu0 %530
  %533 = vset.pattern.permute.xlu0 10
  %534 = vperm.xlu0 %533, %v237
  %v535 = vpop.permute.xlu0 %534
  %537 = vset.pattern.permute.xlu0 10
  %538 = vperm.xlu0 %537, %v242
  %v539 = vpop.permute.xlu0 %538
  %v541 = vlaneseq
  %v542 = vshrl.u32 %v541, 7
  %v543 = vsub.s32 2, %v542
  %v544 = vrot.slane %v261, %v543
  %v545 = vadd.f32 %v527, %v544
  %v546 = vadd.f32 %v531, %v544
  %v547 = vadd.f32 %v535, %v544
  %v548 = vadd.f32 %v539, %v544
  %vm549 = vcmp.ge.f32.partialorder %v545, 0.0
  %vm550 = vcmp.ge.f32.partialorder %v546, 0.0
  %vm551 = vcmp.ge.f32.partialorder %v547, 0.0
  %vm552 = vcmp.ge.f32.partialorder %v548, 0.0
  %v553 = vmul.f32 %v545, 0.2
  %v554 = vmul.f32 %v546, 0.2
  %v555 = vmul.f32 %v547, 0.2
  %v556 = vmul.f32 %v548, 0.2
  %v557 = vsel %vm549, %v545, %v553
  %v558 = vsel %vm550, %v546, %v554
  %v559 = vsel %vm551, %v547, %v555
  %v560 = vsel %vm552, %v548, %v556
  %v561 = vadd.f32 %v557, %v35
  %v562 = vadd.f32 %v558, %v36
  %v563 = vadd.f32 %v559, %v37
  %v564 = vadd.f32 %v560, %v38
  %v565 = vsel %vm353, %v561, -inf
  %566 = vmax.xlane.f32.xlu0 %v565
  %v567 = vpop.xlane.xlu0 %566
  %v568 = vsel %vm353, %v562, -inf
  %569 = vmax.xlane.f32.xlu0 %v568
  %v570 = vpop.xlane.xlu0 %569
  %v571 = vsel %vm353, %v563, -inf
  %572 = vmax.xlane.f32.xlu0 %v571
  %v573 = vpop.xlane.xlu0 %572
  %v574 = vsel %vm353, %v564, -inf
  %575 = vmax.xlane.f32.xlu0 %v574
  %v576 = vpop.xlane.xlu0 %575
  %v577 = vsub.f32 %v561, %v567
  %v578 = vsub.f32 %v562, %v570
  %v579 = vsub.f32 %v563, %v573
  %v580 = vsub.f32 %v564, %v576
  %v581 = vmul.f32 %v577, 1.442695
  %v582 = vpow.pop %v581
  %v583 = vmul.f32 %v578, 1.442695
  %v584 = vpow.pop %v583
  %v585 = vmul.f32 %v579, 1.442695
  %v586 = vpow.pop %v585
  %v587 = vmul.f32 %v580, 1.442695
  %v588 = vpow.pop %v587
  %v589 = vsel %vm353, %v582, 0.0
  %590 = vadd.xlane.f32.xlu0 %v589
  %v591 = vpop.xlane.xlu0 %590
  %v592 = vsel %vm353, %v584, 0.0
  %593 = vadd.xlane.f32.xlu0 %v592
  %v594 = vpop.xlane.xlu0 %593
  %v595 = vsel %vm353, %v586, 0.0
  %596 = vadd.xlane.f32.xlu0 %v595
  %v597 = vpop.xlane.xlu0 %596
  %v598 = vsel %vm353, %v588, 0.0
  %599 = vadd.xlane.f32.xlu0 %v598
  %v600 = vpop.xlane.xlu0 %599
  %v601 = vmax.f32 %v591, 1e-20
  %v602 = vmax.f32 %v594, 1e-20
  %v603 = vmax.f32 %v597, 1e-20
  %v604 = vmax.f32 %v600, 1e-20
  %v605 = vrcp.pop %v601
  %v606 = vrcp.pop %v602
  %v607 = vrcp.pop %v603
  %v608 = vrcp.pop %v604
  %v609 = vmul.f32 %v582, %v605
  %v610 = vmul.f32 %v584, %v606
  %v611 = vmul.f32 %v586, %v607
  %v612 = vmul.f32 %v588, %v608
  %617 = vrot.lane.b32.xlu0 %v609, 64
  %v618 = vpop.permute.xlu0 %617
  %619 = vrot.lane.b32.xlu0 %v610, 64
  %v620 = vpop.permute.xlu0 %619
  %621 = vrot.lane.b32.xlu0 %v611, 64
  %v622 = vpop.permute.xlu0 %621
  %623 = vrot.lane.b32.xlu0 %v612, 64
  %v624 = vpop.permute.xlu0 %623
  %vm629 = vcmask 785920
  %630 = vst.msk [vmem:[#allocation2] sm:$0xff] %vm629, %v618
  %631 = vst.msk [vmem:[#allocation2 + $0x10] sm:$0xff] %vm629, %v620
  %632 = vst.msk [vmem:[#allocation2 + $0x20] sm:$0xff] %vm629, %v622
  %633 = vst.msk [vmem:[#allocation2 + $0x30] sm:$0xff] %vm629, %v624
  %vm634 = vcmask 195712
  %635 = vst.msk [vmem:[#allocation3 + $0x40] sm:$0xff] %vm634, %v121
  %636 = vst.msk [vmem:[#allocation3 + $0x48] sm:$0xff] %vm634, %v126
  %637 = vst.msk [vmem:[#allocation3 + $0x50] sm:$0xff] %vm634, %v131
  %638 = vst.msk [vmem:[#allocation3 + $0x58] sm:$0xff] %vm634, %v136
  %639 = vset.pattern.permute.xlu0 11
  %640 = vperm.xlu0 %639, %v227
  %v641 = vpop.permute.xlu0 %640
  %643 = vset.pattern.permute.xlu0 11
  %644 = vperm.xlu0 %643, %v232
  %v645 = vpop.permute.xlu0 %644
  %647 = vset.pattern.permute.xlu0 11
  %648 = vperm.xlu0 %647, %v237
  %v649 = vpop.permute.xlu0 %648
  %651 = vset.pattern.permute.xlu0 11
  %652 = vperm.xlu0 %651, %v242
  %v653 = vpop.permute.xlu0 %652
  %v655 = vlaneseq
  %v656 = vshrl.u32 %v655, 7
  %v657 = vsub.s32 3, %v656
  %v658 = vrot.slane %v261, %v657
  %v659 = vadd.f32 %v641, %v658
  %v660 = vadd.f32 %v645, %v658
  %v661 = vadd.f32 %v649, %v658
  %v662 = vadd.f32 %v653, %v658
  %vm663 = vcmp.ge.f32.partialorder %v659, 0.0
  %vm664 = vcmp.ge.f32.partialorder %v660, 0.0
  %vm665 = vcmp.ge.f32.partialorder %v661, 0.0
  %vm666 = vcmp.ge.f32.partialorder %v662, 0.0
  %v667 = vmul.f32 %v659, 0.2
  %v668 = vmul.f32 %v660, 0.2
  %v669 = vmul.f32 %v661, 0.2
  %v670 = vmul.f32 %v662, 0.2
  %v671 = vsel %vm663, %v659, %v667
  %v672 = vsel %vm664, %v660, %v668
  %v673 = vsel %vm665, %v661, %v669
  %v674 = vsel %vm666, %v662, %v670
  %v675 = vadd.f32 %v671, %v35
  %v676 = vadd.f32 %v672, %v36
  %v677 = vadd.f32 %v673, %v37
  %v678 = vadd.f32 %v674, %v38
  %v679 = vsel %vm353, %v675, -inf
  %680 = vmax.xlane.f32.xlu0 %v679
  %v681 = vpop.xlane.xlu0 %680
  %v682 = vsel %vm353, %v676, -inf
  %683 = vmax.xlane.f32.xlu0 %v682
  %v684 = vpop.xlane.xlu0 %683
  %v685 = vsel %vm353, %v677, -inf
  %686 = vmax.xlane.f32.xlu0 %v685
  %v687 = vpop.xlane.xlu0 %686
  %v688 = vsel %vm353, %v678, -inf
  %689 = vmax.xlane.f32.xlu0 %v688
  %v690 = vpop.xlane.xlu0 %689
  %v691 = vsub.f32 %v675, %v681
  %v692 = vsub.f32 %v676, %v684
  %v693 = vsub.f32 %v677, %v687
  %v694 = vsub.f32 %v678, %v690
  %v695 = vmul.f32 %v691, 1.442695
  %v696 = vpow.pop %v695
  %v697 = vmul.f32 %v692, 1.442695
  %v698 = vpow.pop %v697
  %v699 = vmul.f32 %v693, 1.442695
  %v700 = vpow.pop %v699
  %v701 = vmul.f32 %v694, 1.442695
  %v702 = vpow.pop %v701
  %v703 = vsel %vm353, %v696, 0.0
  %704 = vadd.xlane.f32.xlu0 %v703
  %v705 = vpop.xlane.xlu0 %704
  %v706 = vsel %vm353, %v698, 0.0
  %707 = vadd.xlane.f32.xlu0 %v706
  %v708 = vpop.xlane.xlu0 %707
  %v709 = vsel %vm353, %v700, 0.0
  %710 = vadd.xlane.f32.xlu0 %v709
  %v711 = vpop.xlane.xlu0 %710
  %v712 = vsel %vm353, %v702, 0.0
  %713 = vadd.xlane.f32.xlu0 %v712
  %v714 = vpop.xlane.xlu0 %713
  %v715 = vmax.f32 %v705, 1e-20
  %v716 = vmax.f32 %v708, 1e-20
  %v717 = vmax.f32 %v711, 1e-20
  %v718 = vmax.f32 %v714, 1e-20
  %v719 = vrcp.pop %v715
  %v720 = vrcp.pop %v716
  %v721 = vrcp.pop %v717
  %v722 = vrcp.pop %v718
  %v723 = vmul.f32 %v696, %v719
  %v724 = vmul.f32 %v698, %v720
  %v725 = vmul.f32 %v700, %v721
  %v726 = vmul.f32 %v702, %v722
  %731 = vrot.lane.b32.xlu0 %v723, 96
  %v732 = vpop.permute.xlu0 %731
  %733 = vrot.lane.b32.xlu0 %v724, 96
  %v734 = vpop.permute.xlu0 %733
  %735 = vrot.lane.b32.xlu0 %v725, 96
  %v736 = vpop.permute.xlu0 %735
  %737 = vrot.lane.b32.xlu0 %v726, 96
  %v738 = vpop.permute.xlu0 %737
  %vm743 = vcmask 1048320
  %744 = vst.msk [vmem:[#allocation2] sm:$0xff] %vm743, %v732
  %745 = vst.msk [vmem:[#allocation2 + $0x10] sm:$0xff] %vm743, %v734
  %746 = vst.msk [vmem:[#allocation2 + $0x20] sm:$0xff] %vm743, %v736
  %747 = vst.msk [vmem:[#allocation2 + $0x30] sm:$0xff] %vm743, %v738
  %vm748 = vcmask 261312
  %749 = vst.msk [vmem:[#allocation3 + $0x60] sm:$0xff] %vm748, %v121
  %750 = vst.msk [vmem:[#allocation3 + $0x68] sm:$0xff] %vm748, %v126
  %751 = vst.msk [vmem:[#allocation3 + $0x70] sm:$0xff] %vm748, %v131
  %752 = vst.msk [vmem:[#allocation3 + $0x78] sm:$0xff] %vm748, %v136
  %753 = vset.pattern.permute.xlu0 12
  %754 = vperm.xlu0 %753, %v227
  %v755 = vpop.permute.xlu0 %754
  %757 = vset.pattern.permute.xlu0 12
  %758 = vperm.xlu0 %757, %v232
  %v759 = vpop.permute.xlu0 %758
  %761 = vset.pattern.permute.xlu0 12
  %762 = vperm.xlu0 %761, %v237
  %v763 = vpop.permute.xlu0 %762
  %765 = vset.pattern.permute.xlu0 12
  %766 = vperm.xlu0 %765, %v242
  %v767 = vpop.permute.xlu0 %766
  %v769 = vlaneseq
  %v770 = vshrl.u32 %v769, 7
  %v771 = vsub.s32 4, %v770
  %v772 = vrot.slane %v261, %v771
  %v773 = vadd.f32 %v755, %v772
  %v774 = vadd.f32 %v759, %v772
  %v775 = vadd.f32 %v763, %v772
  %v776 = vadd.f32 %v767, %v772
  %vm777 = vcmp.ge.f32.partialorder %v773, 0.0
  %vm778 = vcmp.ge.f32.partialorder %v774, 0.0
  %vm779 = vcmp.ge.f32.partialorder %v775, 0.0
  %vm780 = vcmp.ge.f32.partialorder %v776, 0.0
  %v781 = vmul.f32 %v773, 0.2
  %v782 = vmul.f32 %v774, 0.2
  %v783 = vmul.f32 %v775, 0.2
  %v784 = vmul.f32 %v776, 0.2
  %v785 = vsel %vm777, %v773, %v781
  %v786 = vsel %vm778, %v774, %v782
  %v787 = vsel %vm779, %v775, %v783
  %v788 = vsel %vm780, %v776, %v784
  %v789 = vadd.f32 %v785, %v35
  %v790 = vadd.f32 %v786, %v36
  %v791 = vadd.f32 %v787, %v37
  %v792 = vadd.f32 %v788, %v38
  %v793 = vsel %vm353, %v789, -inf
  %794 = vmax.xlane.f32.xlu0 %v793
  %v795 = vpop.xlane.xlu0 %794
  %v796 = vsel %vm353, %v790, -inf
  %797 = vmax.xlane.f32.xlu0 %v796
  %v798 = vpop.xlane.xlu0 %797
  %v799 = vsel %vm353, %v791, -inf
  %800 = vmax.xlane.f32.xlu0 %v799
  %v801 = vpop.xlane.xlu0 %800
  %v802 = vsel %vm353, %v792, -inf
  %803 = vmax.xlane.f32.xlu0 %v802
  %v804 = vpop.xlane.xlu0 %803
  %v805 = vsub.f32 %v789, %v795
  %v806 = vsub.f32 %v790, %v798
  %v807 = vsub.f32 %v791, %v801
  %v808 = vsub.f32 %v792, %v804
  %v809 = vmul.f32 %v805, 1.442695
  %v810 = vpow.pop %v809
  %v811 = vmul.f32 %v806, 1.442695
  %v812 = vpow.pop %v811
  %v813 = vmul.f32 %v807, 1.442695
  %v814 = vpow.pop %v813
  %v815 = vmul.f32 %v808, 1.442695
  %v816 = vpow.pop %v815
  %v817 = vsel %vm353, %v810, 0.0
  %818 = vadd.xlane.f32.xlu0 %v817
  %v819 = vpop.xlane.xlu0 %818
  %v820 = vsel %vm353, %v812, 0.0
  %821 = vadd.xlane.f32.xlu0 %v820
  %v822 = vpop.xlane.xlu0 %821
  %v823 = vsel %vm353, %v814, 0.0
  %824 = vadd.xlane.f32.xlu0 %v823
  %v825 = vpop.xlane.xlu0 %824
  %v826 = vsel %vm353, %v816, 0.0
  %827 = vadd.xlane.f32.xlu0 %v826
  %v828 = vpop.xlane.xlu0 %827
  %v829 = vmax.f32 %v819, 1e-20
  %v830 = vmax.f32 %v822, 1e-20
  %v831 = vmax.f32 %v825, 1e-20
  %v832 = vmax.f32 %v828, 1e-20
  %v833 = vrcp.pop %v829
  %v834 = vrcp.pop %v830
  %v835 = vrcp.pop %v831
  %v836 = vrcp.pop %v832
  %v837 = vmul.f32 %v810, %v833
  %v838 = vmul.f32 %v812, %v834
  %v839 = vmul.f32 %v814, %v835
  %v840 = vmul.f32 %v816, %v836
  %841 = vst.msk [vmem:[#allocation2 + $0x8] sm:$0xff] %vm353, %v837
  %842 = vst.msk [vmem:[#allocation2 + $0x18] sm:$0xff] %vm353, %v838
  %843 = vst.msk [vmem:[#allocation2 + $0x28] sm:$0xff] %vm353, %v839
  %844 = vst.msk [vmem:[#allocation2 + $0x38] sm:$0xff] %vm353, %v840
  %vm845 = vcmask 326912
  %846 = vst.msk [vmem:[#allocation3 + $0x80] sm:$0xff] %vm845, %v121
  %847 = vst.msk [vmem:[#allocation3 + $0x88] sm:$0xff] %vm845, %v126
  %848 = vst.msk [vmem:[#allocation3 + $0x90] sm:$0xff] %vm845, %v131
  %849 = vst.msk [vmem:[#allocation3 + $0x98] sm:$0xff] %vm845, %v136
  %850 = vset.pattern.permute.xlu0 13
  %851 = vperm.xlu0 %850, %v227
  %v852 = vpop.permute.xlu0 %851
  %854 = vset.pattern.permute.xlu0 13
  %855 = vperm.xlu0 %854, %v232
  %v856 = vpop.permute.xlu0 %855
  %858 = vset.pattern.permute.xlu0 13
  %859 = vperm.xlu0 %858, %v237
  %v860 = vpop.permute.xlu0 %859
  %862 = vset.pattern.permute.xlu0 13
  %863 = vperm.xlu0 %862, %v242
  %v864 = vpop.permute.xlu0 %863
  %v866 = vlaneseq
  %v867 = vshrl.u32 %v866, 7
  %v868 = vsub.s32 5, %v867
  %v869 = vrot.slane %v261, %v868
  %v870 = vadd.f32 %v852, %v869
  %v871 = vadd.f32 %v856, %v869
  %v872 = vadd.f32 %v860, %v869
  %v873 = vadd.f32 %v864, %v869
  %vm874 = vcmp.ge.f32.partialorder %v870, 0.0
  %vm875 = vcmp.ge.f32.partialorder %v871, 0.0
  %vm876 = vcmp.ge.f32.partialorder %v872, 0.0
  %vm877 = vcmp.ge.f32.partialorder %v873, 0.0
  %v878 = vmul.f32 %v870, 0.2
  %v879 = vmul.f32 %v871, 0.2
  %v880 = vmul.f32 %v872, 0.2
  %v881 = vmul.f32 %v873, 0.2
  %v882 = vsel %vm874, %v870, %v878
  %v883 = vsel %vm875, %v871, %v879
  %v884 = vsel %vm876, %v872, %v880
  %v885 = vsel %vm877, %v873, %v881
  %v886 = vadd.f32 %v882, %v35
  %v887 = vadd.f32 %v883, %v36
  %v888 = vadd.f32 %v884, %v37
  %v889 = vadd.f32 %v885, %v38
  %v890 = vsel %vm353, %v886, -inf
  %891 = vmax.xlane.f32.xlu0 %v890
  %v892 = vpop.xlane.xlu0 %891
  %v893 = vsel %vm353, %v887, -inf
  %894 = vmax.xlane.f32.xlu0 %v893
  %v895 = vpop.xlane.xlu0 %894
  %v896 = vsel %vm353, %v888, -inf
  %897 = vmax.xlane.f32.xlu0 %v896
  %v898 = vpop.xlane.xlu0 %897
  %v899 = vsel %vm353, %v889, -inf
  %900 = vmax.xlane.f32.xlu0 %v899
  %v901 = vpop.xlane.xlu0 %900
  %v902 = vsub.f32 %v886, %v892
  %v903 = vsub.f32 %v887, %v895
  %v904 = vsub.f32 %v888, %v898
  %v905 = vsub.f32 %v889, %v901
  %v906 = vmul.f32 %v902, 1.442695
  %v907 = vpow.pop %v906
  %v908 = vmul.f32 %v903, 1.442695
  %v909 = vpow.pop %v908
  %v910 = vmul.f32 %v904, 1.442695
  %v911 = vpow.pop %v910
  %v912 = vmul.f32 %v905, 1.442695
  %v913 = vpow.pop %v912
  %v914 = vsel %vm353, %v907, 0.0
  %915 = vadd.xlane.f32.xlu0 %v914
  %v916 = vpop.xlane.xlu0 %915
  %v917 = vsel %vm353, %v909, 0.0
  %918 = vadd.xlane.f32.xlu0 %v917
  %v919 = vpop.xlane.xlu0 %918
  %v920 = vsel %vm353, %v911, 0.0
  %921 = vadd.xlane.f32.xlu0 %v920
  %v922 = vpop.xlane.xlu0 %921
  %v923 = vsel %vm353, %v913, 0.0
  %924 = vadd.xlane.f32.xlu0 %v923
  %v925 = vpop.xlane.xlu0 %924
  %v926 = vmax.f32 %v916, 1e-20
  %v927 = vmax.f32 %v919, 1e-20
  %v928 = vmax.f32 %v922, 1e-20
  %v929 = vmax.f32 %v925, 1e-20
  %v930 = vrcp.pop %v926
  %v931 = vrcp.pop %v927
  %v932 = vrcp.pop %v928
  %v933 = vrcp.pop %v929
  %v934 = vmul.f32 %v907, %v930
  %v935 = vmul.f32 %v909, %v931
  %v936 = vmul.f32 %v911, %v932
  %v937 = vmul.f32 %v913, %v933
  %942 = vrot.lane.b32.xlu0 %v934, 32
  %v943 = vpop.permute.xlu0 %942
  %944 = vrot.lane.b32.xlu0 %v935, 32
  %v945 = vpop.permute.xlu0 %944
  %946 = vrot.lane.b32.xlu0 %v936, 32
  %v947 = vpop.permute.xlu0 %946
  %948 = vrot.lane.b32.xlu0 %v937, 32
  %v949 = vpop.permute.xlu0 %948
  %954 = vst.msk [vmem:[#allocation2 + $0x8] sm:$0xff] %vm515, %v943
  %955 = vst.msk [vmem:[#allocation2 + $0x18] sm:$0xff] %vm515, %v945
  %956 = vst.msk [vmem:[#allocation2 + $0x28] sm:$0xff] %vm515, %v947
  %957 = vst.msk [vmem:[#allocation2 + $0x38] sm:$0xff] %vm515, %v949
  %vm958 = vcmask 392512
  %959 = vst.msk [vmem:[#allocation3 + $0xa0] sm:$0xff] %vm958, %v121
  %960 = vst.msk [vmem:[#allocation3 + $0xa8] sm:$0xff] %vm958, %v126
  %961 = vst.msk [vmem:[#allocation3 + $0xb0] sm:$0xff] %vm958, %v131
  %962 = vst.msk [vmem:[#allocation3 + $0xb8] sm:$0xff] %vm958, %v136
  %963 = vset.pattern.permute.xlu0 14
  %964 = vperm.xlu0 %963, %v227
  %v965 = vpop.permute.xlu0 %964
  %967 = vset.pattern.permute.xlu0 14
  %968 = vperm.xlu0 %967, %v232
  %v969 = vpop.permute.xlu0 %968
  %971 = vset.pattern.permute.xlu0 14
  %972 = vperm.xlu0 %971, %v237
  %v973 = vpop.permute.xlu0 %972
  %975 = vset.pattern.permute.xlu0 14
  %976 = vperm.xlu0 %975, %v242
  %v977 = vpop.permute.xlu0 %976
  %v979 = vlaneseq
  %v980 = vshrl.u32 %v979, 7
  %v981 = vsub.s32 6, %v980
  %v982 = vrot.slane %v261, %v981
  %v983 = vadd.f32 %v965, %v982
  %v984 = vadd.f32 %v969, %v982
  %v985 = vadd.f32 %v973, %v982
  %v986 = vadd.f32 %v977, %v982
  %vm987 = vcmp.ge.f32.partialorder %v983, 0.0
  %vm988 = vcmp.ge.f32.partialorder %v984, 0.0
  %vm989 = vcmp.ge.f32.partialorder %v985, 0.0
  %vm990 = vcmp.ge.f32.partialorder %v986, 0.0
  %v991 = vmul.f32 %v983, 0.2
  %v992 = vmul.f32 %v984, 0.2
  %v993 = vmul.f32 %v985, 0.2
  %v994 = vmul.f32 %v986, 0.2
  %v995 = vsel %vm987, %v983, %v991
  %v996 = vsel %vm988, %v984, %v992
  %v997 = vsel %vm989, %v985, %v993
  %v998 = vsel %vm990, %v986, %v994
  %v999 = vadd.f32 %v995, %v35
  %v1000 = vadd.f32 %v996, %v36
  %v1001 = vadd.f32 %v997, %v37
  %v1002 = vadd.f32 %v998, %v38
  %v1003 = vsel %vm353, %v999, -inf
  %1004 = vmax.xlane.f32.xlu0 %v1003
  %v1005 = vpop.xlane.xlu0 %1004
  %v1006 = vsel %vm353, %v1000, -inf
  %1007 = vmax.xlane.f32.xlu0 %v1006
  %v1008 = vpop.xlane.xlu0 %1007
  %v1009 = vsel %vm353, %v1001, -inf
  %1010 = vmax.xlane.f32.xlu0 %v1009
  %v1011 = vpop.xlane.xlu0 %1010
  %v1012 = vsel %vm353, %v1002, -inf
  %1013 = vmax.xlane.f32.xlu0 %v1012
  %v1014 = vpop.xlane.xlu0 %1013
  %v1015 = vsub.f32 %v999, %v1005
  %v1016 = vsub.f32 %v1000, %v1008
  %v1017 = vsub.f32 %v1001, %v1011
  %v1018 = vsub.f32 %v1002, %v1014
  %v1019 = vmul.f32 %v1015, 1.442695
  %v1020 = vpow.pop %v1019
  %v1021 = vmul.f32 %v1016, 1.442695
  %v1022 = vpow.pop %v1021
  %v1023 = vmul.f32 %v1017, 1.442695
  %v1024 = vpow.pop %v1023
  %v1025 = vmul.f32 %v1018, 1.442695
  %v1026 = vpow.pop %v1025
  %v1027 = vsel %vm353, %v1020, 0.0
  %1028 = vadd.xlane.f32.xlu0 %v1027
  %v1029 = vpop.xlane.xlu0 %1028
  %v1030 = vsel %vm353, %v1022, 0.0
  %1031 = vadd.xlane.f32.xlu0 %v1030
  %v1032 = vpop.xlane.xlu0 %1031
  %v1033 = vsel %vm353, %v1024, 0.0
  %1034 = vadd.xlane.f32.xlu0 %v1033
  %v1035 = vpop.xlane.xlu0 %1034
  %v1036 = vsel %vm353, %v1026, 0.0
  %1037 = vadd.xlane.f32.xlu0 %v1036
  %v1038 = vpop.xlane.xlu0 %1037
  %v1039 = vmax.f32 %v1029, 1e-20
  %v1040 = vmax.f32 %v1032, 1e-20
  %v1041 = vmax.f32 %v1035, 1e-20
  %v1042 = vmax.f32 %v1038, 1e-20
  %v1043 = vrcp.pop %v1039
  %v1044 = vrcp.pop %v1040
  %v1045 = vrcp.pop %v1041
  %v1046 = vrcp.pop %v1042
  %v1047 = vmul.f32 %v1020, %v1043
  %v1048 = vmul.f32 %v1022, %v1044
  %v1049 = vmul.f32 %v1024, %v1045
  %v1050 = vmul.f32 %v1026, %v1046
  %1055 = vrot.lane.b32.xlu0 %v1047, 64
  %v1056 = vpop.permute.xlu0 %1055
  %1057 = vrot.lane.b32.xlu0 %v1048, 64
  %v1058 = vpop.permute.xlu0 %1057
  %1059 = vrot.lane.b32.xlu0 %v1049, 64
  %v1060 = vpop.permute.xlu0 %1059
  %1061 = vrot.lane.b32.xlu0 %v1050, 64
  %v1062 = vpop.permute.xlu0 %1061
  %1067 = vst.msk [vmem:[#allocation2 + $0x8] sm:$0xff] %vm629, %v1056
  %1068 = vst.msk [vmem:[#allocation2 + $0x18] sm:$0xff] %vm629, %v1058
  %1069 = vst.msk [vmem:[#allocation2 + $0x28] sm:$0xff] %vm629, %v1060
  %1070 = vst.msk [vmem:[#allocation2 + $0x38] sm:$0xff] %vm629, %v1062
  %vm1071 = vcmask 458112
  %1072 = vst.msk [vmem:[#allocation3 + $0xc0] sm:$0xff] %vm1071, %v121
  %1073 = vst.msk [vmem:[#allocation3 + $0xc8] sm:$0xff] %vm1071, %v126
  %1074 = vst.msk [vmem:[#allocation3 + $0xd0] sm:$0xff] %vm1071, %v131
  %1075 = vst.msk [vmem:[#allocation3 + $0xd8] sm:$0xff] %vm1071, %v136
  %1076 = vset.pattern.permute.xlu0 15
  %1077 = vperm.xlu0 %1076, %v227
  %v1078 = vpop.permute.xlu0 %1077
  %1080 = vset.pattern.permute.xlu0 15
  %1081 = vperm.xlu0 %1080, %v232
  %v1082 = vpop.permute.xlu0 %1081
  %1084 = vset.pattern.permute.xlu0 15
  %1085 = vperm.xlu0 %1084, %v237
  %v1086 = vpop.permute.xlu0 %1085
  %1088 = vset.pattern.permute.xlu0 15
  %1089 = vperm.xlu0 %1088, %v242
  %v1090 = vpop.permute.xlu0 %1089
  %v1092 = vlaneseq
  %v1093 = vshrl.u32 %v1092, 7
  %v1094 = vsub.s32 7, %v1093
  %v1095 = vrot.slane %v261, %v1094
  %v1096 = vadd.f32 %v1078, %v1095
  %v1097 = vadd.f32 %v1082, %v1095
  %v1098 = vadd.f32 %v1086, %v1095
  %v1099 = vadd.f32 %v1090, %v1095
  %vm1100 = vcmp.ge.f32.partialorder %v1096, 0.0
  %vm1101 = vcmp.ge.f32.partialorder %v1097, 0.0
  %vm1102 = vcmp.ge.f32.partialorder %v1098, 0.0
  %vm1103 = vcmp.ge.f32.partialorder %v1099, 0.0
  %v1104 = vmul.f32 %v1096, 0.2
  %v1105 = vmul.f32 %v1097, 0.2
  %v1106 = vmul.f32 %v1098, 0.2
  %v1107 = vmul.f32 %v1099, 0.2
  %v1108 = vsel %vm1100, %v1096, %v1104
  %v1109 = vsel %vm1101, %v1097, %v1105
  %v1110 = vsel %vm1102, %v1098, %v1106
  %v1111 = vsel %vm1103, %v1099, %v1107
  %v1112 = vadd.f32 %v1108, %v35
  %v1113 = vadd.f32 %v1109, %v36
  %v1114 = vadd.f32 %v1110, %v37
  %v1115 = vadd.f32 %v1111, %v38
  %v1116 = vsel %vm353, %v1112, -inf
  %1117 = vmax.xlane.f32.xlu0 %v1116
  %v1118 = vpop.xlane.xlu0 %1117
  %v1119 = vsel %vm353, %v1113, -inf
  %1120 = vmax.xlane.f32.xlu0 %v1119
  %v1121 = vpop.xlane.xlu0 %1120
  %v1122 = vsel %vm353, %v1114, -inf
  %1123 = vmax.xlane.f32.xlu0 %v1122
  %v1124 = vpop.xlane.xlu0 %1123
  %v1125 = vsel %vm353, %v1115, -inf
  %1126 = vmax.xlane.f32.xlu0 %v1125
  %v1127 = vpop.xlane.xlu0 %1126
  %v1128 = vsub.f32 %v1112, %v1118
  %v1129 = vsub.f32 %v1113, %v1121
  %v1130 = vsub.f32 %v1114, %v1124
  %v1131 = vsub.f32 %v1115, %v1127
  %v1132 = vmul.f32 %v1128, 1.442695
  %v1133 = vpow.pop %v1132
  %v1134 = vmul.f32 %v1129, 1.442695
  %v1135 = vpow.pop %v1134
  %v1136 = vmul.f32 %v1130, 1.442695
  %v1137 = vpow.pop %v1136
  %v1138 = vmul.f32 %v1131, 1.442695
  %v1139 = vpow.pop %v1138
  %v1140 = vsel %vm353, %v1133, 0.0
  %1141 = vadd.xlane.f32.xlu0 %v1140
  %v1142 = vpop.xlane.xlu0 %1141
  %v1143 = vsel %vm353, %v1135, 0.0
  %1144 = vadd.xlane.f32.xlu0 %v1143
  %v1145 = vpop.xlane.xlu0 %1144
  %v1146 = vsel %vm353, %v1137, 0.0
  %1147 = vadd.xlane.f32.xlu0 %v1146
  %v1148 = vpop.xlane.xlu0 %1147
  %v1149 = vsel %vm353, %v1139, 0.0
  %1150 = vadd.xlane.f32.xlu0 %v1149
  %v1151 = vpop.xlane.xlu0 %1150
  %v1152 = vmax.f32 %v1142, 1e-20
  %v1153 = vmax.f32 %v1145, 1e-20
  %v1154 = vmax.f32 %v1148, 1e-20
  %v1155 = vmax.f32 %v1151, 1e-20
  %v1156 = vrcp.pop %v1152
  %v1157 = vrcp.pop %v1153
  %v1158 = vrcp.pop %v1154
  %v1159 = vrcp.pop %v1155
  %v1160 = vmul.f32 %v1133, %v1156
  %v1161 = vmul.f32 %v1135, %v1157
  %v1162 = vmul.f32 %v1137, %v1158
  %v1163 = vmul.f32 %v1139, %v1159
  %1168 = vrot.lane.b32.xlu0 %v1160, 96
  %v1169 = vpop.permute.xlu0 %1168
  %1170 = vrot.lane.b32.xlu0 %v1161, 96
  %v1171 = vpop.permute.xlu0 %1170
  %1172 = vrot.lane.b32.xlu0 %v1162, 96
  %v1173 = vpop.permute.xlu0 %1172
  %1174 = vrot.lane.b32.xlu0 %v1163, 96
  %v1175 = vpop.permute.xlu0 %1174
  %1180 = vst.msk [vmem:[#allocation2 + $0x8] sm:$0xff] %vm743, %v1169
  %1181 = vst.msk [vmem:[#allocation2 + $0x18] sm:$0xff] %vm743, %v1171
  %1182 = vst.msk [vmem:[#allocation2 + $0x28] sm:$0xff] %vm743, %v1173
  %1183 = vst.msk [vmem:[#allocation2 + $0x38] sm:$0xff] %vm743, %v1175
  %vm1184 = vcmask 523712
  %1185 = vst.msk [vmem:[#allocation3 + $0xe0] sm:$0xff] %vm1184, %v121
  %1186 = vst.msk [vmem:[#allocation3 + $0xe8] sm:$0xff] %vm1184, %v126
  %1187 = vst.msk [vmem:[#allocation3 + $0xf0] sm:$0xff] %vm1184, %v131
  %1188 = vst.msk [vmem:[#allocation3 + $0xf8] sm:$0xff] %vm1184, %v136
  %v1189 = vld [vmem:[#allocation2] sm:$0xff]
  %v1190 = vld [vmem:[#allocation2 + $0x8] sm:$0xff]
  %v1191 = vld [vmem:[#allocation2 + $0x10] sm:$0xff]
  %v1192 = vld [vmem:[#allocation2 + $0x18] sm:$0xff]
  %v1193 = vld [vmem:[#allocation2 + $0x20] sm:$0xff]
  %v1194 = vld [vmem:[#allocation2 + $0x28] sm:$0xff]
  %v1195 = vld [vmem:[#allocation2 + $0x30] sm:$0xff]
  %v1196 = vld [vmem:[#allocation2 + $0x38] sm:$0xff]
  %v1197 = vld [vmem:[#allocation3] sm:$0xff]
  %v1198 = vld [vmem:[#allocation3 + $0x8] sm:$0xff]
  %v1199 = vld [vmem:[#allocation3 + $0x10] sm:$0xff]
  %v1200 = vld [vmem:[#allocation3 + $0x18] sm:$0xff]
  %v1201 = vld [vmem:[#allocation3 + $0x20] sm:$0xff]
  %v1202 = vld [vmem:[#allocation3 + $0x28] sm:$0xff]
  %v1203 = vld [vmem:[#allocation3 + $0x30] sm:$0xff]
  %v1204 = vld [vmem:[#allocation3 + $0x38] sm:$0xff]
  %v1205 = vld [vmem:[#allocation3 + $0x40] sm:$0xff]
  %v1206 = vld [vmem:[#allocation3 + $0x48] sm:$0xff]
  %v1207 = vld [vmem:[#allocation3 + $0x50] sm:$0xff]
  %v1208 = vld [vmem:[#allocation3 + $0x58] sm:$0xff]
  %v1209 = vld [vmem:[#allocation3 + $0x60] sm:$0xff]
  %v1210 = vld [vmem:[#allocation3 + $0x68] sm:$0xff]
  %v1211 = vld [vmem:[#allocation3 + $0x70] sm:$0xff]
  %v1212 = vld [vmem:[#allocation3 + $0x78] sm:$0xff]
  %v1213 = vld [vmem:[#allocation3 + $0x80] sm:$0xff]
  %v1214 = vld [vmem:[#allocation3 + $0x88] sm:$0xff]
  %v1215 = vld [vmem:[#allocation3 + $0x90] sm:$0xff]
  %v1216 = vld [vmem:[#allocation3 + $0x98] sm:$0xff]
  %v1217 = vld [vmem:[#allocation3 + $0xa0] sm:$0xff]
  %v1218 = vld [vmem:[#allocation3 + $0xa8] sm:$0xff]
  %v1219 = vld [vmem:[#allocation3 + $0xb0] sm:$0xff]
  %v1220 = vld [vmem:[#allocation3 + $0xb8] sm:$0xff]
  %v1221 = vld [vmem:[#allocation3 + $0xc0] sm:$0xff]
  %v1222 = vld [vmem:[#allocation3 + $0xc8] sm:$0xff]
  %v1223 = vld [vmem:[#allocation3 + $0xd0] sm:$0xff]
  %v1224 = vld [vmem:[#allocation3 + $0xd8] sm:$0xff]
  %v1225 = vld [vmem:[#allocation3 + $0xe0] sm:$0xff]
  %v1226 = vld [vmem:[#allocation3 + $0xe8] sm:$0xff]
  %v1227 = vld [vmem:[#allocation3 + $0xf0] sm:$0xff]
  %v1228 = vld [vmem:[#allocation3 + $0xf8] sm:$0xff]
  %1229 = vmatprep.subr.mxu0 0.0
  %1230 = vmatpush1.msra.mxu0 %v1197
  %1231 = vmatprep.subr.mxu0 0.0
  %1232 = vmatpush1.msra.mxu0 %v1198
  %1233 = vmatprep.subr.mxu0 0.0
  %1234 = vmatpush1.msra.mxu0 %v1199
  %1235 = vmatprep.subr.mxu0 0.0
  %1236 = vmatpush1.msra.mxu0 %v1200
  %1237 = vmatprep.subr.mxu0 0.0
  %1238 = vmatpush1.msra.mxu0 %v1201
  %1239 = vmatprep.subr.mxu0 0.0
  %1240 = vmatpush1.msra.mxu0 %v1202
  %1241 = vmatprep.subr.mxu0 0.0
  %1242 = vmatpush1.msra.mxu0 %v1203
  %1243 = vmatprep.subr.mxu0 0.0
  %1244 = vmatpush1.msra.mxu0 %v1204
  %1245 = vmatprep.subr.mxu0 0.0
  %1246 = vmatpush1.msra.mxu0 %v1205
  %1247 = vmatprep.subr.mxu0 0.0
  %1248 = vmatpush1.msra.mxu0 %v1206
  %1249 = vmatprep.subr.mxu0 0.0
  %1250 = vmatpush1.msra.mxu0 %v1207
  %1251 = vmatprep.subr.mxu0 0.0
  %1252 = vmatpush1.msra.mxu0 %v1208
  %1253 = vmatprep.subr.mxu0 0.0
  %1254 = vmatpush1.msra.mxu0 %v1209
  %1255 = vmatprep.subr.mxu0 0.0
  %1256 = vmatpush1.msra.mxu0 %v1210
  %1257 = vmatprep.subr.mxu0 0.0
  %1258 = vmatpush1.msra.mxu0 %v1211
  %1259 = vmatprep.subr.mxu0 0.0
  %1260 = vmatpush1.msra.mxu0 %v1212
  %1261 = vmatprep.subr.mxu0 0.0
  %1262 = vmatpush1.msra.mxu0 %v1213
  %1263 = vmatprep.subr.mxu0 0.0
  %1264 = vmatpush1.msra.mxu0 %v1214
  %1265 = vmatprep.subr.mxu0 0.0
  %1266 = vmatpush1.msra.mxu0 %v1215
  %1267 = vmatprep.subr.mxu0 0.0
  %1268 = vmatpush1.msra.mxu0 %v1216
  %1269 = vmatprep.subr.mxu0 0.0
  %1270 = vmatpush1.msra.mxu0 %v1217
  %1271 = vmatprep.subr.mxu0 0.0
  %1272 = vmatpush1.msra.mxu0 %v1218
  %1273 = vmatprep.subr.mxu0 0.0
  %1274 = vmatpush1.msra.mxu0 %v1219
  %1275 = vmatprep.subr.mxu0 0.0
  %1276 = vmatpush1.msra.mxu0 %v1220
  %1277 = vmatprep.subr.mxu0 0.0
  %1278 = vmatpush1.msra.mxu0 %v1221
  %1279 = vmatprep.subr.mxu0 0.0
  %1280 = vmatpush1.msra.mxu0 %v1222
  %1281 = vmatprep.subr.mxu0 0.0
  %1282 = vmatpush1.msra.mxu0 %v1223
  %1283 = vmatprep.subr.mxu0 0.0
  %1284 = vmatpush1.msra.mxu0 %v1224
  %1285 = vmatprep.subr.mxu0 0.0
  %1286 = vmatpush1.msra.mxu0 %v1225
  %1287 = vmatprep.subr.mxu0 0.0
  %1288 = vmatpush1.msra.mxu0 %v1226
  %1289 = vmatprep.subr.mxu0 0.0
  %1290 = vmatpush1.msra.mxu0 %v1227
  %1291 = vmatprep.subr.mxu0 0.0
  %1292 = vmatpush1.msra.mxu0 %v1228
  %1293 = vmatprep.mubr.f32.mxu0 %v1190
  %1294 = vmatmul.mubr.f32.gmra.mrb[0].mxu0 %v1189
  %v1295 = vpop.f32.mrb[0].mxu0
  %v1296 = vadd.f32 0.0, %v1295
  %v1297 = vpop.f32.mrb[0].mxu0
  %1298 = vmatprep.mubr.f32.mxu0 %v1192
  %1299 = vmatmul.mubr.f32.gmra.mrb[0].mxu0 %v1191
  %v1300 = vpop.f32.mrb[0].mxu0
  %v1301 = vadd.f32 0.0, %v1300
  %v1302 = vpop.f32.mrb[0].mxu0
  %1303 = vmatprep.mubr.f32.mxu0 %v1194
  %1304 = vmatmul.mubr.f32.gmra.mrb[0].mxu0 %v1193
  %v1305 = vpop.f32.mrb[0].mxu0
  %v1306 = vadd.f32 0.0, %v1305
  %v1307 = vpop.f32.mrb[0].mxu0
  %1308 = vmatprep.mubr.f32.mxu0 %v1196
  %1309 = vmatmul.mubr.f32.gmra.mrb[0].mxu0 %v1195
  %v1310 = vpop.f32.mrb[0].mxu0
  %v1311 = vadd.f32 0.0, %v1310
  %v1312 = vpop.f32.mrb[0].mxu0
  %1313 = vdwg.mxu0
  %vm1314 = vcmp.gt.f32.partialorder %v1296, 0.0
  %vm1315 = vcmp.gt.f32.partialorder %v1301, 0.0
  %vm1316 = vcmp.gt.f32.partialorder %v1306, 0.0
  %vm1317 = vcmp.gt.f32.partialorder %v1311, 0.0
  %v1318 = vmul.f32 %v1296, 1.442695
  %v1319 = vpow.pop %v1318
  %v1320 = vmul.f32 %v1301, 1.442695
  %v1321 = vpow.pop %v1320
  %v1322 = vmul.f32 %v1306, 1.442695
  %v1323 = vpow.pop %v1322
  %v1324 = vmul.f32 %v1311, 1.442695
  %v1325 = vpow.pop %v1324
  %v1326 = vsub.f32 %v1319, 1.0
  %v1327 = vsub.f32 %v1321, 1.0
  %v1328 = vsub.f32 %v1323, 1.0
  %v1329 = vsub.f32 %v1325, 1.0
  %v1330 = vsel %vm1314, %v1296, %v1326
  %v1331 = vsel %vm1315, %v1301, %v1327
  %v1332 = vsel %vm1316, %v1306, %v1328
  %v1333 = vsel %vm1317, %v1311, %v1329
  %v1334 = vld [vmem:[%s4] sm:$0xff]
  %v1335 = vld [vmem:[%s4 + $0x8] sm:$0xff]
  %v1336 = vld [vmem:[%s4 + $0x10] sm:$0xff]
  %v1337 = vld [vmem:[%s4 + $0x18] sm:$0xff]
  %v1338 = vld [vmem:[%s4 + $0x20] sm:$0xff]
  %v1339 = vld [vmem:[%s4 + $0x28] sm:$0xff]
  %v1340 = vld [vmem:[%s4 + $0x30] sm:$0xff]
  %v1341 = vld [vmem:[%s4 + $0x38] sm:$0xff]
  %v1343 = vsel %vm147, %v1330, 0
  %v1346 = vsel %vm147, %v1331, 0
  %v1349 = vsel %vm147, %v1332, 0
  %v1352 = vsel %vm147, %v1333, 0
  %1354 = vmatprep.subr.mxu0 0.0
  %1355 = vmatpush1.msra.mxu0 %v1334
  %1356 = vmatprep.subr.mxu0 0.0
  %1357 = vmatpush1.msra.mxu0 %v1335
  %1358 = vmatprep.subr.mxu0 0.0
  %1359 = vmatpush1.msra.mxu0 %v1336
  %1360 = vmatprep.subr.mxu0 0.0
  %1361 = vmatpush1.msra.mxu0 %v1337
  %1362 = vmatprep.subr.mxu0 0.0
  %1363 = vmatpush1.msra.mxu0 %v1338
  %1364 = vmatprep.subr.mxu0 0.0
  %1365 = vmatpush1.msra.mxu0 %v1339
  %1366 = vmatprep.subr.mxu0 0.0
  %1367 = vmatpush1.msra.mxu0 %v1340
  %1368 = vmatprep.subr.mxu0 0.0
  %1369 = vmatpush1.msra.mxu0 %v1341
  %1370 = vmatprep.subr.mxu0 0.0
  %1371 = vmatpush1.msra.mxu0 0.0
  %1372 = vmatprep.subr.mxu0 0.0
  %1373 = vmatpush1.msra.mxu0 0.0
  %1374 = vmatprep.subr.mxu0 0.0
  %1375 = vmatpush1.msra.mxu0 0.0
  %1376 = vmatprep.subr.mxu0 0.0
  %1377 = vmatpush1.msra.mxu0 0.0
  %1378 = vmatprep.subr.mxu0 0.0
  %1379 = vmatpush1.msra.mxu0 0.0
  %1380 = vmatprep.subr.mxu0 0.0
  %1381 = vmatpush1.msra.mxu0 0.0
  %1382 = vmatprep.subr.mxu0 0.0
  %1383 = vmatpush1.msra.mxu0 0.0
  %1384 = vmatprep.subr.mxu0 0.0
  %1385 = vmatpush1.msra.mxu0 0.0
  %1386 = vmatprep.subr.mxu0 0.0
  %1387 = vmatpush1.msra.mxu0 0.0
  %1388 = vmatprep.subr.mxu0 0.0
  %1389 = vmatpush1.msra.mxu0 0.0
  %1390 = vmatprep.subr.mxu0 0.0
  %1391 = vmatpush1.msra.mxu0 0.0
  %1392 = vmatprep.subr.mxu0 0.0
  %1393 = vmatpush1.msra.mxu0 0.0
  %1394 = vmatprep.subr.mxu0 0.0
  %1395 = vmatpush1.msra.mxu0 0.0
  %1396 = vmatprep.subr.mxu0 0.0
  %1397 = vmatpush1.msra.mxu0 0.0
  %1398 = vmatprep.subr.mxu0 0.0
  %1399 = vmatpush1.msra.mxu0 0.0
  %1400 = vmatprep.subr.mxu0 0.0
  %1401 = vmatpush1.msra.mxu0 0.0
  %1402 = vmatprep.subr.mxu0 0.0
  %1403 = vmatpush1.msra.mxu0 0.0
  %1404 = vmatprep.subr.mxu0 0.0
  %1405 = vmatpush1.msra.mxu0 0.0
  %1406 = vmatprep.subr.mxu0 0.0
  %1407 = vmatpush1.msra.mxu0 0.0
  %1408 = vmatprep.subr.mxu0 0.0
  %1409 = vmatpush1.msra.mxu0 0.0
  %1410 = vmatprep.subr.mxu0 0.0
  %1411 = vmatpush1.msra.mxu0 0.0
  %1412 = vmatprep.subr.mxu0 0.0
  %1413 = vmatpush1.msra.mxu0 0.0
  %1414 = vmatprep.subr.mxu0 0.0
  %1415 = vmatpush1.msra.mxu0 0.0
  %1416 = vmatprep.subr.mxu0 0.0
  %1417 = vmatpush1.msra.mxu0 0.0
  %1418 = vmatprep.mubr.f32.mxu0 0.0
  %1419 = vmatmul.mubr.f32.gmra.mrb[0].mxu0 %v1343
  %v1420 = vpop.f32.mrb[0].mxu0
  %v1421 = vadd.f32 0.0, %v1420
  %v1422 = vpop.f32.mrb[0].mxu0
  %1423 = vmatprep.mubr.f32.mxu0 0.0
  %1424 = vmatmul.mubr.f32.gmra.mrb[0].mxu0 %v1346
  %v1425 = vpop.f32.mrb[0].mxu0
  %v1426 = vadd.f32 0.0, %v1425
  %v1427 = vpop.f32.mrb[0].mxu0
  %1428 = vmatprep.mubr.f32.mxu0 0.0
  %1429 = vmatmul.mubr.f32.gmra.mrb[0].mxu0 %v1349
  %v1430 = vpop.f32.mrb[0].mxu0
  %v1431 = vadd.f32 0.0, %v1430
  %v1432 = vpop.f32.mrb[0].mxu0
  %1433 = vmatprep.mubr.f32.mxu0 0.0
  %1434 = vmatmul.mubr.f32.gmra.mrb[0].mxu0 %v1352
  %v1435 = vpop.f32.mrb[0].mxu0
  %v1436 = vadd.f32 0.0, %v1435
  %v1437 = vpop.f32.mrb[0].mxu0
  %1438 = vdwg.mxu0
  %v1439 = vld [vmem:[%s5] sm:$0xff]
  %v1440 = vld [vmem:[%s5 + $0x8] sm:$0xff]
  %v1441 = vld [vmem:[%s5 + $0x10] sm:$0xff]
  %v1442 = vld [vmem:[%s5 + $0x18] sm:$0xff]
  %v1443 = vld [vmem:[%s5 + $0x20] sm:$0xff]
  %v1444 = vld [vmem:[%s5 + $0x28] sm:$0xff]
  %v1445 = vld [vmem:[%s5 + $0x30] sm:$0xff]
  %v1446 = vld [vmem:[%s5 + $0x38] sm:$0xff]
  %v1447 = vld [vmem:[%s5 + $0x40] sm:$0xff]
  %v1448 = vld [vmem:[%s5 + $0x48] sm:$0xff]
  %v1449 = vld [vmem:[%s5 + $0x50] sm:$0xff]
  %v1450 = vld [vmem:[%s5 + $0x58] sm:$0xff]
  %v1451 = vld [vmem:[%s5 + $0x60] sm:$0xff]
  %v1452 = vld [vmem:[%s5 + $0x68] sm:$0xff]
  %v1453 = vld [vmem:[%s5 + $0x70] sm:$0xff]
  %v1454 = vld [vmem:[%s5 + $0x78] sm:$0xff]
  %1455 = vmatprep.subr.mxu0 0.0
  %1456 = vmatpush1.msra.mxu0 %v1439
  %1457 = vmatprep.subr.mxu0 0.0
  %1458 = vmatpush1.msra.mxu0 %v1440
  %1459 = vmatprep.subr.mxu0 0.0
  %1460 = vmatpush1.msra.mxu0 %v1441
  %1461 = vmatprep.subr.mxu0 0.0
  %1462 = vmatpush1.msra.mxu0 %v1442
  %1463 = vmatprep.subr.mxu0 0.0
  %1464 = vmatpush1.msra.mxu0 %v1443
  %1465 = vmatprep.subr.mxu0 0.0
  %1466 = vmatpush1.msra.mxu0 %v1444
  %1467 = vmatprep.subr.mxu0 0.0
  %1468 = vmatpush1.msra.mxu0 %v1445
  %1469 = vmatprep.subr.mxu0 0.0
  %1470 = vmatpush1.msra.mxu0 %v1446
  %1471 = vmatprep.subr.mxu0 0.0
  %1472 = vmatpush1.msra.mxu0 %v1447
  %1473 = vmatprep.subr.mxu0 0.0
  %1474 = vmatpush1.msra.mxu0 %v1448
  %1475 = vmatprep.subr.mxu0 0.0
  %1476 = vmatpush1.msra.mxu0 %v1449
  %1477 = vmatprep.subr.mxu0 0.0
  %1478 = vmatpush1.msra.mxu0 %v1450
  %1479 = vmatprep.subr.mxu0 0.0
  %1480 = vmatpush1.msra.mxu0 %v1451
  %1481 = vmatprep.subr.mxu0 0.0
  %1482 = vmatpush1.msra.mxu0 %v1452
  %1483 = vmatprep.subr.mxu0 0.0
  %1484 = vmatpush1.msra.mxu0 %v1453
  %1485 = vmatprep.subr.mxu0 0.0
  %1486 = vmatpush1.msra.mxu0 %v1454
  %1487 = vmatprep.subr.mxu0 0.0
  %1488 = vmatpush1.msra.mxu0 0.0
  %1489 = vmatprep.subr.mxu0 0.0
  %1490 = vmatpush1.msra.mxu0 0.0
  %1491 = vmatprep.subr.mxu0 0.0
  %1492 = vmatpush1.msra.mxu0 0.0
  %1493 = vmatprep.subr.mxu0 0.0
  %1494 = vmatpush1.msra.mxu0 0.0
  %1495 = vmatprep.subr.mxu0 0.0
  %1496 = vmatpush1.msra.mxu0 0.0
  %1497 = vmatprep.subr.mxu0 0.0
  %1498 = vmatpush1.msra.mxu0 0.0
  %1499 = vmatprep.subr.mxu0 0.0
  %1500 = vmatpush1.msra.mxu0 0.0
  %1501 = vmatprep.subr.mxu0 0.0
  %1502 = vmatpush1.msra.mxu0 0.0
  %1503 = vmatprep.subr.mxu0 0.0
  %1504 = vmatpush1.msra.mxu0 0.0
  %1505 = vmatprep.subr.mxu0 0.0
  %1506 = vmatpush1.msra.mxu0 0.0
  %1507 = vmatprep.subr.mxu0 0.0
  %1508 = vmatpush1.msra.mxu0 0.0
  %1509 = vmatprep.subr.mxu0 0.0
  %1510 = vmatpush1.msra.mxu0 0.0
  %1511 = vmatprep.subr.mxu0 0.0
  %1512 = vmatpush1.msra.mxu0 0.0
  %1513 = vmatprep.subr.mxu0 0.0
  %1514 = vmatpush1.msra.mxu0 0.0
  %1515 = vmatprep.subr.mxu0 0.0
  %1516 = vmatpush1.msra.mxu0 0.0
  %1517 = vmatprep.subr.mxu0 0.0
  %1518 = vmatpush1.msra.mxu0 0.0
  %1519 = vmatprep.mubr.f32.mxu0 0.0
  %1520 = vmatmul.mubr.f32.gmra.mrb[0].mxu0 %v1421
  %v1521 = vpop.f32.mrb[0].mxu0
  %v1522 = vadd.f32 0.0, %v1521
  %v1523 = vpop.f32.mrb[0].mxu0
  %1524 = vmatprep.mubr.f32.mxu0 0.0
  %1525 = vmatmul.mubr.f32.gmra.mrb[0].mxu0 %v1426
  %v1526 = vpop.f32.mrb[0].mxu0
  %v1527 = vadd.f32 0.0, %v1526
  %v1528 = vpop.f32.mrb[0].mxu0
  %1529 = vmatprep.mubr.f32.mxu0 0.0
  %1530 = vmatmul.mubr.f32.gmra.mrb[0].mxu0 %v1431
  %v1531 = vpop.f32.mrb[0].mxu0
  %v1532 = vadd.f32 0.0, %v1531
  %v1533 = vpop.f32.mrb[0].mxu0
  %1534 = vmatprep.mubr.f32.mxu0 0.0
  %1535 = vmatmul.mubr.f32.gmra.mrb[0].mxu0 %v1436
  %v1536 = vpop.f32.mrb[0].mxu0
  %v1537 = vadd.f32 0.0, %v1536
  %v1538 = vpop.f32.mrb[0].mxu0
  %1539 = vdwg.mxu0
  %1540 = vxpose.xlu0.b32.start [1/16] %v1522, 128
  %1541 = vxpose.xlu0.b32.cont [2/16] %v1527, 128
  %1542 = vxpose.xlu0.b32.cont [3/16] %v1532, 128
  %1543 = vxpose.xlu0.b32.cont [4/16] %v1537, 128
  %1544 = vxpose.xlu0.b32.cont [5/16] 0.0, 128
  %1545 = vxpose.xlu0.b32.cont [6/16] 0.0, 128
  %1546 = vxpose.xlu0.b32.cont [7/16] 0.0, 128
  %1547 = vxpose.xlu0.b32.cont [8/16] 0.0, 128
  %1548 = vxpose.xlu0.b32.cont [9/16] 0.0, 128
  %1549 = vxpose.xlu0.b32.cont [10/16] 0.0, 128
  %1550 = vxpose.xlu0.b32.cont [11/16] 0.0, 128
  %1551 = vxpose.xlu0.b32.cont [12/16] 0.0, 128
  %1552 = vxpose.xlu0.b32.cont [13/16] 0.0, 128
  %1553 = vxpose.xlu0.b32.cont [14/16] 0.0, 128
  %1554 = vxpose.xlu0.b32.cont [15/16] 0.0, 128
  %1555 = vxpose.xlu0.b32.end [16/16] 0.0, 128
  %v1556 = vpop.trf.xlu0
  %v1557 = vpop.trf.xlu0
  %v1558 = vpop.trf.xlu0
  %v1559 = vpop.trf.xlu0
  %v1560 = vpop.trf.xlu0
  %v1561 = vpop.trf.xlu0
  %v1562 = vpop.trf.xlu0
  %v1563 = vpop.trf.xlu0
  %v1564 = vpop.trf.xlu0
  %v1565 = vpop.trf.xlu0
  %v1566 = vpop.trf.xlu0
  %v1567 = vpop.trf.xlu0
  %v1568 = vpop.trf.xlu0
  %v1569 = vpop.trf.xlu0
  %v1570 = vpop.trf.xlu0
  %v1571 = vpop.trf.xlu0
  %1573 = vset.pattern.permute.xlu0 1
  %1574 = vperm.xlu0 %1573, %v1522
  %v1575 = vpop.permute.xlu0 %1574
  %1578 = vset.pattern.permute.xlu0 1
  %1579 = vperm.xlu0 %1578, %v1527
  %v1580 = vpop.permute.xlu0 %1579
  %1583 = vset.pattern.permute.xlu0 1
  %1584 = vperm.xlu0 %1583, %v1532
  %v1585 = vpop.permute.xlu0 %1584
  %1588 = vset.pattern.permute.xlu0 1
  %1589 = vperm.xlu0 %1588, %v1537
  %v1590 = vpop.permute.xlu0 %1589
  %v1592 = vlaneseq
  %v1593 = vshrl.u32 %v1592, 7
  %v1594 = vsub.s32 0, %v1593
  %v1595 = vrot.slane %v1556, %v1594
  %v1596 = vadd.f32 %v1575, %v1595
  %v1597 = vadd.f32 %v1580, %v1595
  %v1598 = vadd.f32 %v1585, %v1595
  %v1599 = vadd.f32 %v1590, %v1595
  %vm1600 = vcmp.ge.f32.partialorder %v1596, 0.0
  %vm1601 = vcmp.ge.f32.partialorder %v1597, 0.0
  %vm1602 = vcmp.ge.f32.partialorder %v1598, 0.0
  %vm1603 = vcmp.ge.f32.partialorder %v1599, 0.0
  %v1604 = vmul.f32 %v1596, 0.2
  %v1605 = vmul.f32 %v1597, 0.2
  %v1606 = vmul.f32 %v1598, 0.2
  %v1607 = vmul.f32 %v1599, 0.2
  %v1608 = vsel %vm1600, %v1596, %v1604
  %v1609 = vsel %vm1601, %v1597, %v1605
  %v1610 = vsel %vm1602, %v1598, %v1606
  %v1611 = vsel %vm1603, %v1599, %v1607
  %v1612 = vadd.f32 %v1608, %v35
  %v1613 = vadd.f32 %v1609, %v36
  %v1614 = vadd.f32 %v1610, %v37
  %v1615 = vadd.f32 %v1611, %v38
  %v1616 = vsel %vm353, %v1612, -inf
  %1617 = vmax.xlane.f32.xlu0 %v1616
  %v1618 = vpop.xlane.xlu0 %1617
  %v1619 = vsel %vm353, %v1613, -inf
  %1620 = vmax.xlane.f32.xlu0 %v1619
  %v1621 = vpop.xlane.xlu0 %1620
  %v1622 = vsel %vm353, %v1614, -inf
  %1623 = vmax.xlane.f32.xlu0 %v1622
  %v1624 = vpop.xlane.xlu0 %1623
  %v1625 = vsel %vm353, %v1615, -inf
  %1626 = vmax.xlane.f32.xlu0 %v1625
  %v1627 = vpop.xlane.xlu0 %1626
  %v1628 = vsub.f32 %v1612, %v1618
  %v1629 = vsub.f32 %v1613, %v1621
  %v1630 = vsub.f32 %v1614, %v1624
  %v1631 = vsub.f32 %v1615, %v1627
  %v1632 = vmul.f32 %v1628, 1.442695
  %v1633 = vpow.pop %v1632
  %v1634 = vmul.f32 %v1629, 1.442695
  %v1635 = vpow.pop %v1634
  %v1636 = vmul.f32 %v1630, 1.442695
  %v1637 = vpow.pop %v1636
  %v1638 = vmul.f32 %v1631, 1.442695
  %v1639 = vpow.pop %v1638
  %v1640 = vsel %vm353, %v1633, 0.0
  %1641 = vadd.xlane.f32.xlu0 %v1640
  %v1642 = vpop.xlane.xlu0 %1641
  %v1643 = vsel %vm353, %v1635, 0.0
  %1644 = vadd.xlane.f32.xlu0 %v1643
  %v1645 = vpop.xlane.xlu0 %1644
  %v1646 = vsel %vm353, %v1637, 0.0
  %1647 = vadd.xlane.f32.xlu0 %v1646
  %v1648 = vpop.xlane.xlu0 %1647
  %v1649 = vsel %vm353, %v1639, 0.0
  %1650 = vadd.xlane.f32.xlu0 %v1649
  %v1651 = vpop.xlane.xlu0 %1650
  %v1652 = vmax.f32 %v1642, 1e-20
  %v1653 = vmax.f32 %v1645, 1e-20
  %v1654 = vmax.f32 %v1648, 1e-20
  %v1655 = vmax.f32 %v1651, 1e-20
  %v1656 = vrcp.pop %v1652
  %v1657 = vrcp.pop %v1653
  %v1658 = vrcp.pop %v1654
  %v1659 = vrcp.pop %v1655
  %v1660 = vmul.f32 %v1633, %v1656
  %v1661 = vmul.f32 %v1635, %v1657
  %v1662 = vmul.f32 %v1637, %v1658
  %v1663 = vmul.f32 %v1639, %v1659
  %v1665 = vsel %vm353, %v1660, 0
  %v1668 = vsel %vm353, %v1661, 0
  %v1671 = vsel %vm353, %v1662, 0
  %v1674 = vsel %vm353, %v1663, 0
  %1676 = vmatprep.subr.mxu0 0.0
  %1677 = vmatpush1.msra.mxu0 %v1421
  %1678 = vmatprep.subr.mxu0 0.0
  %1679 = vmatpush1.msra.mxu0 %v1426
  %1680 = vmatprep.subr.mxu0 0.0
  %1681 = vmatpush1.msra.mxu0 %v1431
  %1682 = vmatprep.subr.mxu0 0.0
  %1683 = vmatpush1.msra.mxu0 %v1436
  %1684 = vmatprep.subr.mxu0 0.0
  %1685 = vmatpush1.msra.mxu0 0.0
  %1686 = vmatprep.subr.mxu0 0.0
  %1687 = vmatpush1.msra.mxu0 0.0
  %1688 = vmatprep.subr.mxu0 0.0
  %1689 = vmatpush1.msra.mxu0 0.0
  %1690 = vmatprep.subr.mxu0 0.0
  %1691 = vmatpush1.msra.mxu0 0.0
  %1692 = vmatprep.subr.mxu0 0.0
  %1693 = vmatpush1.msra.mxu0 0.0
  %1694 = vmatprep.subr.mxu0 0.0
  %1695 = vmatpush1.msra.mxu0 0.0
  %1696 = vmatprep.subr.mxu0 0.0
  %1697 = vmatpush1.msra.mxu0 0.0
  %1698 = vmatprep.subr.mxu0 0.0
  %1699 = vmatpush1.msra.mxu0 0.0
  %1700 = vmatprep.subr.mxu0 0.0
  %1701 = vmatpush1.msra.mxu0 0.0
  %1702 = vmatprep.subr.mxu0 0.0
  %1703 = vmatpush1.msra.mxu0 0.0
  %1704 = vmatprep.subr.mxu0 0.0
  %1705 = vmatpush1.msra.mxu0 0.0
  %1706 = vmatprep.subr.mxu0 0.0
  %1707 = vmatpush1.msra.mxu0 0.0
  %1708 = vmatprep.subr.mxu0 0.0
  %1709 = vmatpush1.msra.mxu0 0.0
  %1710 = vmatprep.subr.mxu0 0.0
  %1711 = vmatpush1.msra.mxu0 0.0
  %1712 = vmatprep.subr.mxu0 0.0
  %1713 = vmatpush1.msra.mxu0 0.0
  %1714 = vmatprep.subr.mxu0 0.0
  %1715 = vmatpush1.msra.mxu0 0.0
  %1716 = vmatprep.subr.mxu0 0.0
  %1717 = vmatpush1.msra.mxu0 0.0
  %1718 = vmatprep.subr.mxu0 0.0
  %1719 = vmatpush1.msra.mxu0 0.0
  %1720 = vmatprep.subr.mxu0 0.0
  %1721 = vmatpush1.msra.mxu0 0.0
  %1722 = vmatprep.subr.mxu0 0.0
  %1723 = vmatpush1.msra.mxu0 0.0
  %1724 = vmatprep.subr.mxu0 0.0
  %1725 = vmatpush1.msra.mxu0 0.0
  %1726 = vmatprep.subr.mxu0 0.0
  %1727 = vmatpush1.msra.mxu0 0.0
  %1728 = vmatprep.subr.mxu0 0.0
  %1729 = vmatpush1.msra.mxu0 0.0
  %1730 = vmatprep.subr.mxu0 0.0
  %1731 = vmatpush1.msra.mxu0 0.0
  %1732 = vmatprep.subr.mxu0 0.0
  %1733 = vmatpush1.msra.mxu0 0.0
  %1734 = vmatprep.subr.mxu0 0.0
  %1735 = vmatpush1.msra.mxu0 0.0
  %1736 = vmatprep.subr.mxu0 0.0
  %1737 = vmatpush1.msra.mxu0 0.0
  %1738 = vmatprep.subr.mxu0 0.0
  %1739 = vmatpush1.msra.mxu0 0.0
  %1740 = vmatprep.mubr.f32.mxu0 0.0
  %1741 = vmatmul.mubr.f32.gmra.mrb[0].mxu0 %v1665
  %v1742 = vpop.f32.mrb[0].mxu0
  %v1743 = vadd.f32 0.0, %v1742
  %v1744 = vpop.f32.mrb[0].mxu0
  %1745 = vmatprep.mubr.f32.mxu0 0.0
  %1746 = vmatmul.mubr.f32.gmra.mrb[0].mxu0 %v1668
  %v1747 = vpop.f32.mrb[0].mxu0
  %v1748 = vadd.f32 0.0, %v1747
  %v1749 = vpop.f32.mrb[0].mxu0
  %1750 = vmatprep.mubr.f32.mxu0 0.0
  %1751 = vmatmul.mubr.f32.gmra.mrb[0].mxu0 %v1671
  %v1752 = vpop.f32.mrb[0].mxu0
  %v1753 = vadd.f32 0.0, %v1752
  %v1754 = vpop.f32.mrb[0].mxu0
  %1755 = vmatprep.mubr.f32.mxu0 0.0
  %1756 = vmatmul.mubr.f32.gmra.mrb[0].mxu0 %v1674
  %v1757 = vpop.f32.mrb[0].mxu0
  %v1758 = vadd.f32 0.0, %v1757
  %v1759 = vpop.f32.mrb[0].mxu0
  %1760 = vdwg.mxu0
  %1761 = vst [vmem:[%s6] sm:$0xff] %v1743
  %1762 = vst [vmem:[%s6 + $0x8] sm:$0xff] %v1748
  %1763 = vst [vmem:[%s6 + $0x10] sm:$0xff] %v1753
  %1764 = vst [vmem:[%s6 + $0x18] sm:$0xff] %v1758
  // Predicated region
  $region26: #{gat_forward_pallas.1} parent=0 // pred_check
    _
  $region27: #{gat_forward_pallas.1} parent=0 // pred_check_branch
    %1766 = sbr.rel (0) target = $region29
  $region28: #{gat_forward_pallas.1} parent=0 // pred_region
    _
  $region29: #{gat_forward_pallas.1} parent=0 // pred_fallthru
    _
  // Predicated region
  $region30: #{gat_forward_pallas.1} parent=0 // pred_check
    _
  $region31: #{gat_forward_pallas.1} parent=0 // pred_check_branch
    %1768 = sbr.rel (0) target = $region33
  $region32: #{gat_forward_pallas.1} parent=0 // pred_region
    _
  $region33: #{gat_forward_pallas.1} parent=0 // pred_fallthru
    _

</llo_original>
